<compile_context>
chip_gen: v5e
topology: v5e:2x2
jax: 0.10.0
libtpu: 0.0.40
codegen_flags: <defaults>
</compile_context>

<pallas_src>
import functools

import jax
import jax.numpy as jnp
from jax.experimental import pallas as pl
from jax.experimental.pallas import tpu as pltpu

BN_EPS = 1e-5


def _se_basic_block_kernel(x_ref, mask_ref, w1_ref, s1_ref, b1_ref,
                           w2_ref, s2_ref, b2_ref, wfc1_ref, wfc2t_ref,
                           out_ref, patch_ref, *, H, W, f32_taps):
    """One lane-block of `bt` images, channels-on-sublane layout.

      x_ref    : (C, L)      f32   input (also residual), L = bt*H*W
      mask_ref : (9, L)      tapdt {0,1} tap-validity masks (precomputed)
      w1_ref   : (C, 9*C)    bf16  conv1 weights, 3x3 taps concatenated on K
      s1/b1    : (C, 1)      f32   folded BN1 scale / bias
      w2_ref   : (C, 9*C)    bf16  conv2 weights
      s2/b2    : (C, 1)      f32   folded BN2 scale / bias
      wfc1_ref : (C, hidden) f32   SE fc1 weight (torch fc1.weight.T)
      wfc2t_ref: (C, hidden) f32   SE fc2 weight (torch fc2.weight)
      out_ref  : (C, L)      f32
      patch_ref: (9*C, L)    bf16  VMEM scratch for the tap patch
    """
    C, L = out_ref.shape
    HW = H * W
    bt = L // HW
    tap_dtype = jnp.float32 if f32_taps else jnp.bfloat16

    def conv3x3(x_val, w_ref):
        """3x3 'same' conv as ONE (C, 9C) x (9C, L) MXU contraction.

        Taps are built by lane-rolls + precomputed multiplicative masks and
        staged into the bf16 VMEM patch scratch.
        """
        for t in range(9):
            dh, dw = t // 3 - 1, t % 3 - 1
            shift = dh * W + dw                    # flattened-spatial offset
            if shift == 0:
                tap = x_val                        # centre tap: no shift/mask
            else:
                tap = jnp.roll(x_val, -shift, axis=1) * mask_ref[t:t + 1, :]
            patch_ref[t * C:(t + 1) * C, :] = tap.astype(jnp.bfloat16)
        return jnp.dot(w_ref[...], patch_ref[...],
                       preferred_element_type=jnp.float32)       # (C, L) f32

    # conv1 -> BN1 (folded) -> ReLU   (only the tap-dtype cast of x feeds it;
    # the f32 residual is re-read from x_ref at the end instead of held live)
    out1 = jnp.maximum(
        conv3x3(x_ref[...].astype(tap_dtype), w1_ref) * s1_ref[...]
        + b1_ref[...], 0.0)

    # conv2 -> BN2 (folded)
    out2 = conv3x3(out1.astype(tap_dtype), w2_ref) * s2_ref[...] + b2_ref[...]

    # SE (per image) + channel scale + residual add + ReLU.
    # hidden = C/reduction is tiny -> keep it off the MXU (VPU/XLU/EUP only).
    for b in range(bt):
        seg = slice(b * HW, (b + 1) * HW)
        o2 = out2[:, seg]                                            # (C, HW)
        y = jnp.mean(o2, axis=1, keepdims=True)                      # (C, 1)
        h = jnp.maximum(
            jnp.sum(wfc1_ref[...] * y, axis=0, keepdims=True), 0.0)  # (1, hid)
        s = jax.nn.sigmoid(
            jnp.sum(wfc2t_ref[...] * h, axis=1, keepdims=True))      # (C, 1)
        out_ref[:, seg] = jnp.maximum(o2 * s + x_ref[:, seg], 0.0)


def _is_v5():
    """Pick the f32-tap path on v5 chips (no bf16 VALU)."""
    try:
        return "v5" in jax.devices()[0].device_kind.lower()
    except Exception:
        return False


def _pick_bt(B, HW):
    """Images per grid step: largest divisor of B that keeps >= 4 grid steps
    (>= 2 per v7x TensorCore) and a modest lane block (<= 32*256 lanes)."""
    bt = 1
    for cand in range(1, B + 1):
        if B % cand == 0 and B // cand >= 4 and cand * HW <= 32 * 256:
            bt = cand
    return bt


def se_basic_block(x_nchw, params, *, bt=None, f32_taps=None):
    """Forward pass of SEBasicBlock. x_nchw: (B, C, H, W) float32 (NCHW)."""
    B, C, H, W = x_nchw.shape
    HW = H * W
    assert C % 8 == 0 and HW % 128 == 0, "demo assumes TPU-friendly C and H*W"

    if f32_taps is None:
        f32_taps = _is_v5()
    tap_dtype = jnp.float32 if f32_taps else jnp.bfloat16

    if bt is None:
        bt = _pick_bt(B, HW)
    assert B % bt == 0
    L = bt * HW
    steps = B // bt

    # (B, C, H, W) -> (C, B*HW): one-time XLA transpose in the wrapper.
    x = jnp.transpose(x_nchw.reshape(B, C, HW), (1, 0, 2)).reshape(C, B * HW)

    # 3x3 tap-validity masks, {0,1}, one row per tap, tiled bt times on lanes.
    hh = jnp.arange(HW, dtype=jnp.int32) // W
    ww = jnp.arange(HW, dtype=jnp.int32) % W
    rows = []
    for t in range(9):
        dh, dw = t // 3 - 1, t % 3 - 1
        rows.append((hh + dh >= 0) & (hh + dh < H) &
                    (ww + dw >= 0) & (ww + dw < W))
    mask = jnp.tile(jnp.stack(rows, 0).astype(tap_dtype), (1, bt))    # (9, L)

    # conv weights: torch OIHW (Cout, Cin, 3, 3) -> (Cout, 9*Cin), taps on K.
    def cat_taps(w):
        return jnp.transpose(w, (0, 2, 3, 1)).reshape(C, 9 * C)

    w1k = cat_taps(params["w1"]).astype(jnp.bfloat16)
    w2k = cat_taps(params["w2"]).astype(jnp.bfloat16)

    # fold eval-mode BN into per-channel scale / bias, shaped (C, 1).
    def fold_bn(g, b, m, v):
        s = g / jnp.sqrt(v + BN_EPS)
        return s.reshape(C, 1), (b - m * s).reshape(C, 1)

    s1, b1 = fold_bn(params["g1"], params["b1"], params["m1"], params["v1"])
    s2, b2 = fold_bn(params["g2"], params["b2"], params["m2"], params["v2"])

    wfc1 = params["wfc1"]                 # (C, hidden) == torch fc1.weight.T
    wfc2t = params["wfc2"].T              # (C, hidden) == torch fc2.weight
    hidden = wfc1.shape[1]

    # Constant operands: block index never changes across the grid, so Pallas
    # skips re-DMA for them after the first step (verified pattern); explicit
    # single-buffering only matters for the larger planned C=64/128 variants.
    const = lambda shape: pl.BlockSpec(shape, lambda i, n=len(shape): (0,) * n)

    out = pl.pallas_call(
        functools.partial(_se_basic_block_kernel, H=H, W=W,
                          f32_taps=f32_taps),
        out_shape=jax.ShapeDtypeStruct((C, B * HW), jnp.float32),
        grid_spec=pltpu.PrefetchScalarGridSpec(
            num_scalar_prefetch=0,
            grid=(steps,),
            in_specs=[
                pl.BlockSpec((C, L), lambda i: (0, i)),   # x (also residual)
                const((9, L)),            # tap-validity masks
                const((C, 9 * C)),        # conv1 weights (bf16)
                const((C, 1)),            # bn1 scale
                const((C, 1)),            # bn1 bias
                const((C, 9 * C)),        # conv2 weights (bf16)
                const((C, 1)),            # bn2 scale
                const((C, 1)),            # bn2 bias
                const((C, hidden)),       # SE fc1 weight
                const((C, hidden)),       # SE fc2 weight (transposed)
            ],
            out_specs=pl.BlockSpec((C, L), lambda i: (0, i)),
            scratch_shapes=[pltpu.VMEM((9 * C, L), jnp.bfloat16)],
        ),
        compiler_params=pltpu.CompilerParams(
            dimension_semantics=("parallel",)),
    )(x, mask, w1k, s1, b1, w2k, s2, b2, wfc1, wfc2t)

    return jnp.transpose(out.reshape(C, B, HW), (1, 0, 2)).reshape(B, C, H, W)


def se_basic_block_reference(x, params):
    """Pure-JAX f32 reference (NCHW), mirrors the PyTorch forward."""
    def conv(inp, w):
        return jax.lax.conv_general_dilated(
            inp, w, (1, 1), ((1, 1), (1, 1)),
            dimension_numbers=("NCHW", "OIHW", "NCHW"),
            precision=jax.lax.Precision.HIGHEST)

    def bn(inp, g, b, m, v):
        s = (g / jnp.sqrt(v + BN_EPS))[None, :, None, None]
        return (inp - m[None, :, None, None]) * s + b[None, :, None, None]

    out = jax.nn.relu(bn(conv(x, params["w1"]),
                         params["g1"], params["b1"], params["m1"], params["v1"]))
    out = bn(conv(out, params["w2"]),
             params["g2"], params["b2"], params["m2"], params["v2"])
    y = out.mean(axis=(2, 3))                              # (B, C)
    y = jax.nn.relu(y @ params["wfc1"])
    y = jax.nn.sigmoid(y @ params["wfc2"])
    out = out * y[:, :, None, None]
    return jax.nn.relu(out + x)


if __name__ == "__main__":
    B, C, H, W = 2, 32, 16, 16         # inplanes = planes = 32, stride 1
    reduction = 16
    hidden = C // reduction

    key = jax.random.PRNGKey(0)
    ks = jax.random.split(key, 14)

    x = jax.random.normal(ks[0], (B, C, H, W), jnp.float32)
    params = {
        "w1": 0.1 * jax.random.normal(ks[1], (C, C, 3, 3), jnp.float32),
        "g1": 1.0 + 0.1 * jax.random.normal(ks[2], (C,), jnp.float32),
        "b1": 0.1 * jax.random.normal(ks[3], (C,), jnp.float32),
        "m1": 0.1 * jax.random.normal(ks[4], (C,), jnp.float32),
        "v1": 0.5 + jax.random.uniform(ks[5], (C,), jnp.float32),
        "w2": 0.1 * jax.random.normal(ks[6], (C, C, 3, 3), jnp.float32),
        "g2": 1.0 + 0.1 * jax.random.normal(ks[7], (C,), jnp.float32),
        "b2": 0.1 * jax.random.normal(ks[8], (C,), jnp.float32),
        "m2": 0.1 * jax.random.normal(ks[9], (C,), jnp.float32),
        "v2": 0.5 + jax.random.uniform(ks[10], (C,), jnp.float32),
        "wfc1": 0.3 * jax.random.normal(ks[11], (C, hidden), jnp.float32),
        "wfc2": 0.3 * jax.random.normal(ks[12], (hidden, C), jnp.float32),
    }

    out = jax.block_until_ready(se_basic_block(x, params))
    ref = jax.block_until_ready(se_basic_block_reference(x, params))

    assert out.shape == (B, C, H, W)
    max_err = float(jnp.max(jnp.abs(out - ref)))
    # Tolerance accounts for bf16 MXU inputs (f32 accumulation) across two
    # chained convs vs. the Precision.HIGHEST f32 reference.
    assert jnp.allclose(out, ref, atol=3e-2, rtol=3e-2), (
        f"max abs err {max_err}")
    print("KERNEL_OK")
</pallas_src>

<mosaic_0001>
module attributes {stable_mosaic.version = 11 : i64} {
  func.func @_se_basic_block_kernel(%arg0: i32, %arg1: memref<32x256xf32, #tpu.memory_space<vmem>>, %arg2: memref<9x256xbf16, #tpu.memory_space<vmem>>, %arg3: memref<32x288xbf16, #tpu.memory_space<vmem>>, %arg4: memref<32x1xf32, #tpu.memory_space<vmem>>, %arg5: memref<32x1xf32, #tpu.memory_space<vmem>>, %arg6: memref<32x288xbf16, #tpu.memory_space<vmem>>, %arg7: memref<32x1xf32, #tpu.memory_space<vmem>>, %arg8: memref<32x1xf32, #tpu.memory_space<vmem>>, %arg9: memref<32x2xf32, #tpu.memory_space<vmem>>, %arg10: memref<32x2xf32, #tpu.memory_space<vmem>>, %arg11: memref<32x256xf32, #tpu.memory_space<vmem>>, %arg12: memref<288x256xbf16, #tpu.memory_space<vmem>>) attributes {dimension_semantics = [#tpu.dimension_semantics<parallel>], iteration_bounds = array<i64: 2>, scalar_prefetch = 0 : i64, scratch_operands = 1 : i64, tpu.core_type = #tpu.core_type<tc>, window_params = [{transform_indices = @transform_0, window_bounds = array<i64: 32, 256>}, {pipeline_mode = #tpu.pipeline_mode<synchronous>, transform_indices = @transform_1, window_bounds = array<i64: 9, 256>}, {pipeline_mode = #tpu.pipeline_mode<synchronous>, transform_indices = @transform_2, window_bounds = array<i64: 32, 288>}, {pipeline_mode = #tpu.pipeline_mode<synchronous>, transform_indices = @transform_3, window_bounds = array<i64: 32, 1>}, {pipeline_mode = #tpu.pipeline_mode<synchronous>, transform_indices = @transform_4, window_bounds = array<i64: 32, 1>}, {pipeline_mode = #tpu.pipeline_mode<synchronous>, transform_indices = @transform_5, window_bounds = array<i64: 32, 288>}, {pipeline_mode = #tpu.pipeline_mode<synchronous>, transform_indices = @transform_6, window_bounds = array<i64: 32, 1>}, {pipeline_mode = #tpu.pipeline_mode<synchronous>, transform_indices = @transform_7, window_bounds = array<i64: 32, 1>}, {pipeline_mode = #tpu.pipeline_mode<synchronous>, transform_indices = @transform_8, window_bounds = array<i64: 32, 2>}, {pipeline_mode = #tpu.pipeline_mode<synchronous>, transform_indices = @transform_9, window_bounds = array<i64: 32, 2>}, {transform_indices = @transform_10, window_bounds = array<i64: 32, 256>}]} {
    %c0 = arith.constant 0 : index
    %c0_0 = arith.constant 0 : index
    %0 = vector.load %arg1[%c0, %c0_0] : memref<32x256xf32, #tpu.memory_space<vmem>>, vector<32x256xf32>
    %1 = arith.truncf %0 : vector<32x256xf32> to vector<32x256xbf16>
    %2 = vector.extract_strided_slice %1 {offsets = [0, 239], sizes = [32, 17], strides = [1, 1]} : vector<32x256xbf16> to vector<32x17xbf16>
    %3 = vector.extract_strided_slice %1 {offsets = [0, 0], sizes = [32, 239], strides = [1, 1]} : vector<32x256xbf16> to vector<32x239xbf16>
    %4 = tpu.concatenate %2, %3 in 1 : vector<32x17xbf16>, vector<32x239xbf16> -> vector<32x256xbf16>
    %c0_1 = arith.constant 0 : index
    %c0_2 = arith.constant 0 : index
    %5 = vector.load %arg2[%c0_1, %c0_2] : memref<9x256xbf16, #tpu.memory_space<vmem>>, vector<1x256xbf16>
    %6 = vector.broadcast %5 : vector<1x256xbf16> to vector<32x256xbf16>
    %7 = arith.mulf %4, %6 : vector<32x256xbf16>
    %c0_3 = arith.constant 0 : index
    %c0_4 = arith.constant 0 : index
    %8 = vector.load %arg12[%c0_3, %c0_4] : memref<288x256xbf16, #tpu.memory_space<vmem>>, vector<32x256xbf16>
    tpu.vector_store %arg12[%c0_3, %c0_4], %7 {strides = array<i32>} : memref<288x256xbf16, #tpu.memory_space<vmem>>, vector<32x256xbf16>,
    %9 = vector.extract_strided_slice %1 {offsets = [0, 240], sizes = [32, 16], strides = [1, 1]} : vector<32x256xbf16> to vector<32x16xbf16>
    %10 = vector.extract_strided_slice %1 {offsets = [0, 0], sizes = [32, 240], strides = [1, 1]} : vector<32x256xbf16> to vector<32x240xbf16>
    %11 = tpu.concatenate %9, %10 in 1 : vector<32x16xbf16>, vector<32x240xbf16> -> vector<32x256xbf16>
    %c1 = arith.constant 1 : index
    %c0_5 = arith.constant 0 : index
    %12 = vector.load %arg2[%c1, %c0_5] : memref<9x256xbf16, #tpu.memory_space<vmem>>, vector<1x256xbf16>
    %13 = vector.broadcast %12 : vector<1x256xbf16> to vector<32x256xbf16>
    %14 = arith.mulf %11, %13 : vector<32x256xbf16>
    %c32 = arith.constant 32 : index
    %c0_6 = arith.constant 0 : index
    %15 = vector.load %arg12[%c32, %c0_6] : memref<288x256xbf16, #tpu.memory_space<vmem>>, vector<32x256xbf16>
    tpu.vector_store %arg12[%c32, %c0_6], %14 {strides = array<i32>} : memref<288x256xbf16, #tpu.memory_space<vmem>>, vector<32x256xbf16>,
    %16 = vector.extract_strided_slice %1 {offsets = [0, 241], sizes = [32, 15], strides = [1, 1]} : vector<32x256xbf16> to vector<32x15xbf16>
    %17 = vector.extract_strided_slice %1 {offsets = [0, 0], sizes = [32, 241], strides = [1, 1]} : vector<32x256xbf16> to vector<32x241xbf16>
    %18 = tpu.concatenate %16, %17 in 1 : vector<32x15xbf16>, vector<32x241xbf16> -> vector<32x256xbf16>
    %c2 = arith.constant 2 : index
    %c0_7 = arith.constant 0 : index
    %19 = vector.load %arg2[%c2, %c0_7] : memref<9x256xbf16, #tpu.memory_space<vmem>>, vector<1x256xbf16>
    %20 = vector.broadcast %19 : vector<1x256xbf16> to vector<32x256xbf16>
    %21 = arith.mulf %18, %20 : vector<32x256xbf16>
    %c64 = arith.constant 64 : index
    %c0_8 = arith.constant 0 : index
    %22 = vector.load %arg12[%c64, %c0_8] : memref<288x256xbf16, #tpu.memory_space<vmem>>, vector<32x256xbf16>
    tpu.vector_store %arg12[%c64, %c0_8], %21 {strides = array<i32>} : memref<288x256xbf16, #tpu.memory_space<vmem>>, vector<32x256xbf16>,
    %23 = vector.extract_strided_slice %1 {offsets = [0, 255], sizes = [32, 1], strides = [1, 1]} : vector<32x256xbf16> to vector<32x1xbf16>
    %24 = vector.extract_strided_slice %1 {offsets = [0, 0], sizes = [32, 255], strides = [1, 1]} : vector<32x256xbf16> to vector<32x255xbf16>
    %25 = tpu.concatenate %23, %24 in 1 : vector<32x1xbf16>, vector<32x255xbf16> -> vector<32x256xbf16>
    %c3 = arith.constant 3 : index
    %c0_9 = arith.constant 0 : index
    %26 = vector.load %arg2[%c3, %c0_9] : memref<9x256xbf16, #tpu.memory_space<vmem>>, vector<1x256xbf16>
    %27 = vector.broadcast %26 : vector<1x256xbf16> to vector<32x256xbf16>
    %28 = arith.mulf %25, %27 : vector<32x256xbf16>
    %c96 = arith.constant 96 : index
    %c0_10 = arith.constant 0 : index
    %29 = vector.load %arg12[%c96, %c0_10] : memref<288x256xbf16, #tpu.memory_space<vmem>>, vector<32x256xbf16>
    tpu.vector_store %arg12[%c96, %c0_10], %28 {strides = array<i32>} : memref<288x256xbf16, #tpu.memory_space<vmem>>, vector<32x256xbf16>,
    %c128 = arith.constant 128 : index
    %c0_11 = arith.constant 0 : index
    %30 = vector.load %arg12[%c128, %c0_11] : memref<288x256xbf16, #tpu.memory_space<vmem>>, vector<32x256xbf16>
    tpu.vector_store %arg12[%c128, %c0_11], %1 {strides = array<i32>} : memref<288x256xbf16, #tpu.memory_space<vmem>>, vector<32x256xbf16>,
    %31 = vector.extract_strided_slice %1 {offsets = [0, 1], sizes = [32, 255], strides = [1, 1]} : vector<32x256xbf16> to vector<32x255xbf16>
    %32 = vector.extract_strided_slice %1 {offsets = [0, 0], sizes = [32, 1], strides = [1, 1]} : vector<32x256xbf16> to vector<32x1xbf16>
    %33 = tpu.concatenate %31, %32 in 1 : vector<32x255xbf16>, vector<32x1xbf16> -> vector<32x256xbf16>
    %c5 = arith.constant 5 : index
    %c0_12 = arith.constant 0 : index
    %34 = vector.load %arg2[%c5, %c0_12] : memref<9x256xbf16, #tpu.memory_space<vmem>>, vector<1x256xbf16>
    %35 = vector.broadcast %34 : vector<1x256xbf16> to vector<32x256xbf16>
    %36 = arith.mulf %33, %35 : vector<32x256xbf16>
    %c160 = arith.constant 160 : index
    %c0_13 = arith.constant 0 : index
    %37 = vector.load %arg12[%c160, %c0_13] : memref<288x256xbf16, #tpu.memory_space<vmem>>, vector<32x256xbf16>
    tpu.vector_store %arg12[%c160, %c0_13], %36 {strides = array<i32>} : memref<288x256xbf16, #tpu.memory_space<vmem>>, vector<32x256xbf16>,
    %38 = vector.extract_strided_slice %1 {offsets = [0, 15], sizes = [32, 241], strides = [1, 1]} : vector<32x256xbf16> to vector<32x241xbf16>
    %39 = vector.extract_strided_slice %1 {offsets = [0, 0], sizes = [32, 15], strides = [1, 1]} : vector<32x256xbf16> to vector<32x15xbf16>
    %40 = tpu.concatenate %38, %39 in 1 : vector<32x241xbf16>, vector<32x15xbf16> -> vector<32x256xbf16>
    %c6 = arith.constant 6 : index
    %c0_14 = arith.constant 0 : index
    %41 = vector.load %arg2[%c6, %c0_14] : memref<9x256xbf16, #tpu.memory_space<vmem>>, vector<1x256xbf16>
    %42 = vector.broadcast %41 : vector<1x256xbf16> to vector<32x256xbf16>
    %43 = arith.mulf %40, %42 : vector<32x256xbf16>
    %c192 = arith.constant 192 : index
    %c0_15 = arith.constant 0 : index
    %44 = vector.load %arg12[%c192, %c0_15] : memref<288x256xbf16, #tpu.memory_space<vmem>>, vector<32x256xbf16>
    tpu.vector_store %arg12[%c192, %c0_15], %43 {strides = array<i32>} : memref<288x256xbf16, #tpu.memory_space<vmem>>, vector<32x256xbf16>,
    %45 = vector.extract_strided_slice %1 {offsets = [0, 16], sizes = [32, 240], strides = [1, 1]} : vector<32x256xbf16> to vector<32x240xbf16>
    %46 = vector.extract_strided_slice %1 {offsets = [0, 0], sizes = [32, 16], strides = [1, 1]} : vector<32x256xbf16> to vector<32x16xbf16>
    %47 = tpu.concatenate %45, %46 in 1 : vector<32x240xbf16>, vector<32x16xbf16> -> vector<32x256xbf16>
    %c7 = arith.constant 7 : index
    %c0_16 = arith.constant 0 : index
    %48 = vector.load %arg2[%c7, %c0_16] : memref<9x256xbf16, #tpu.memory_space<vmem>>, vector<1x256xbf16>
    %49 = vector.broadcast %48 : vector<1x256xbf16> to vector<32x256xbf16>
    %50 = arith.mulf %47, %49 : vector<32x256xbf16>
    %c224 = arith.constant 224 : index
    %c0_17 = arith.constant 0 : index
    %51 = vector.load %arg12[%c224, %c0_17] : memref<288x256xbf16, #tpu.memory_space<vmem>>, vector<32x256xbf16>
    tpu.vector_store %arg12[%c224, %c0_17], %50 {strides = array<i32>} : memref<288x256xbf16, #tpu.memory_space<vmem>>, vector<32x256xbf16>,
    %52 = vector.extract_strided_slice %1 {offsets = [0, 17], sizes = [32, 239], strides = [1, 1]} : vector<32x256xbf16> to vector<32x239xbf16>
    %53 = vector.extract_strided_slice %1 {offsets = [0, 0], sizes = [32, 17], strides = [1, 1]} : vector<32x256xbf16> to vector<32x17xbf16>
    %54 = tpu.concatenate %52, %53 in 1 : vector<32x239xbf16>, vector<32x17xbf16> -> vector<32x256xbf16>
    %c8 = arith.constant 8 : index
    %c0_18 = arith.constant 0 : index
    %55 = vector.load %arg2[%c8, %c0_18] : memref<9x256xbf16, #tpu.memory_space<vmem>>, vector<1x256xbf16>
    %56 = vector.broadcast %55 : vector<1x256xbf16> to vector<32x256xbf16>
    %57 = arith.mulf %54, %56 : vector<32x256xbf16>
    %c256 = arith.constant 256 : index
    %c0_19 = arith.constant 0 : index
    %58 = vector.load %arg12[%c256, %c0_19] : memref<288x256xbf16, #tpu.memory_space<vmem>>, vector<32x256xbf16>
    tpu.vector_store %arg12[%c256, %c0_19], %57 {strides = array<i32>} : memref<288x256xbf16, #tpu.memory_space<vmem>>, vector<32x256xbf16>,
    %c0_20 = arith.constant 0 : index
    %c0_21 = arith.constant 0 : index
    %59 = vector.load %arg3[%c0_20, %c0_21] : memref<32x288xbf16, #tpu.memory_space<vmem>>, vector<32x288xbf16>
    %c0_22 = arith.constant 0 : index
    %c0_23 = arith.constant 0 : index
    %60 = vector.load %arg12[%c0_22, %c0_23] : memref<288x256xbf16, #tpu.memory_space<vmem>>, vector<288x256xbf16>
    %cst = arith.constant dense<0.000000e+00> : vector<32x256xf32>
    %61 = tpu.matmul %59, %60, %cst {dimension_numbers = #tpu.dot_dimension_numbers<[1], [0], [0], [1], [0, 0, 1, 1], [], []>} : vector<32x288xbf16>, vector<288x256xbf16>, vector<32x256xf32> -> vector<32x256xf32>
    %c0_24 = arith.constant 0 : index
    %c0_25 = arith.constant 0 : index
    %62 = vector.load %arg4[%c0_24, %c0_25] : memref<32x1xf32, #tpu.memory_space<vmem>>, vector<32x1xf32>
    %63 = vector.broadcast %62 : vector<32x1xf32> to vector<32x256xf32>
    %64 = arith.mulf %61, %63 : vector<32x256xf32>
    %c0_26 = arith.constant 0 : index
    %c0_27 = arith.constant 0 : index
    %65 = vector.load %arg5[%c0_26, %c0_27] : memref<32x1xf32, #tpu.memory_space<vmem>>, vector<32x1xf32>
    %66 = vector.broadcast %65 : vector<32x1xf32> to vector<32x256xf32>
    %67 = arith.addf %64, %66 : vector<32x256xf32>
    %cst_28 = arith.constant 0.000000e+00 : f32
    %68 = vector.broadcast %cst_28 : f32 to vector<32x256xf32>
    %69 = arith.maximumf %67, %68 : vector<32x256xf32>
    %70 = arith.truncf %69 : vector<32x256xf32> to vector<32x256xbf16>
    %71 = vector.extract_strided_slice %70 {offsets = [0, 239], sizes = [32, 17], strides = [1, 1]} : vector<32x256xbf16> to vector<32x17xbf16>
    %72 = vector.extract_strided_slice %70 {offsets = [0, 0], sizes = [32, 239], strides = [1, 1]} : vector<32x256xbf16> to vector<32x239xbf16>
    %73 = tpu.concatenate %71, %72 in 1 : vector<32x17xbf16>, vector<32x239xbf16> -> vector<32x256xbf16>
    %c0_29 = arith.constant 0 : index
    %c0_30 = arith.constant 0 : index
    %74 = vector.load %arg2[%c0_29, %c0_30] : memref<9x256xbf16, #tpu.memory_space<vmem>>, vector<1x256xbf16>
    %75 = vector.broadcast %74 : vector<1x256xbf16> to vector<32x256xbf16>
    %76 = arith.mulf %73, %75 : vector<32x256xbf16>
    %c0_31 = arith.constant 0 : index
    %c0_32 = arith.constant 0 : index
    %77 = vector.load %arg12[%c0_31, %c0_32] : memref<288x256xbf16, #tpu.memory_space<vmem>>, vector<32x256xbf16>
    tpu.vector_store %arg12[%c0_31, %c0_32], %76 {strides = array<i32>} : memref<288x256xbf16, #tpu.memory_space<vmem>>, vector<32x256xbf16>,
    %78 = vector.extract_strided_slice %70 {offsets = [0, 240], sizes = [32, 16], strides = [1, 1]} : vector<32x256xbf16> to vector<32x16xbf16>
    %79 = vector.extract_strided_slice %70 {offsets = [0, 0], sizes = [32, 240], strides = [1, 1]} : vector<32x256xbf16> to vector<32x240xbf16>
    %80 = tpu.concatenate %78, %79 in 1 : vector<32x16xbf16>, vector<32x240xbf16> -> vector<32x256xbf16>
    %c1_33 = arith.constant 1 : index
    %c0_34 = arith.constant 0 : index
    %81 = vector.load %arg2[%c1_33, %c0_34] : memref<9x256xbf16, #tpu.memory_space<vmem>>, vector<1x256xbf16>
    %82 = vector.broadcast %81 : vector<1x256xbf16> to vector<32x256xbf16>
    %83 = arith.mulf %80, %82 : vector<32x256xbf16>
    %c32_35 = arith.constant 32 : index
    %c0_36 = arith.constant 0 : index
    %84 = vector.load %arg12[%c32_35, %c0_36] : memref<288x256xbf16, #tpu.memory_space<vmem>>, vector<32x256xbf16>
    tpu.vector_store %arg12[%c32_35, %c0_36], %83 {strides = array<i32>} : memref<288x256xbf16, #tpu.memory_space<vmem>>, vector<32x256xbf16>,
    %85 = vector.extract_strided_slice %70 {offsets = [0, 241], sizes = [32, 15], strides = [1, 1]} : vector<32x256xbf16> to vector<32x15xbf16>
    %86 = vector.extract_strided_slice %70 {offsets = [0, 0], sizes = [32, 241], strides = [1, 1]} : vector<32x256xbf16> to vector<32x241xbf16>
    %87 = tpu.concatenate %85, %86 in 1 : vector<32x15xbf16>, vector<32x241xbf16> -> vector<32x256xbf16>
    %c2_37 = arith.constant 2 : index
    %c0_38 = arith.constant 0 : index
    %88 = vector.load %arg2[%c2_37, %c0_38] : memref<9x256xbf16, #tpu.memory_space<vmem>>, vector<1x256xbf16>
    %89 = vector.broadcast %88 : vector<1x256xbf16> to vector<32x256xbf16>
    %90 = arith.mulf %87, %89 : vector<32x256xbf16>
    %c64_39 = arith.constant 64 : index
    %c0_40 = arith.constant 0 : index
    %91 = vector.load %arg12[%c64_39, %c0_40] : memref<288x256xbf16, #tpu.memory_space<vmem>>, vector<32x256xbf16>
    tpu.vector_store %arg12[%c64_39, %c0_40], %90 {strides = array<i32>} : memref<288x256xbf16, #tpu.memory_space<vmem>>, vector<32x256xbf16>,
    %92 = vector.extract_strided_slice %70 {offsets = [0, 255], sizes = [32, 1], strides = [1, 1]} : vector<32x256xbf16> to vector<32x1xbf16>
    %93 = vector.extract_strided_slice %70 {offsets = [0, 0], sizes = [32, 255], strides = [1, 1]} : vector<32x256xbf16> to vector<32x255xbf16>
    %94 = tpu.concatenate %92, %93 in 1 : vector<32x1xbf16>, vector<32x255xbf16> -> vector<32x256xbf16>
    %c3_41 = arith.constant 3 : index
    %c0_42 = arith.constant 0 : index
    %95 = vector.load %arg2[%c3_41, %c0_42] : memref<9x256xbf16, #tpu.memory_space<vmem>>, vector<1x256xbf16>
    %96 = vector.broadcast %95 : vector<1x256xbf16> to vector<32x256xbf16>
    %97 = arith.mulf %94, %96 : vector<32x256xbf16>
    %c96_43 = arith.constant 96 : index
    %c0_44 = arith.constant 0 : index
    %98 = vector.load %arg12[%c96_43, %c0_44] : memref<288x256xbf16, #tpu.memory_space<vmem>>, vector<32x256xbf16>
    tpu.vector_store %arg12[%c96_43, %c0_44], %97 {strides = array<i32>} : memref<288x256xbf16, #tpu.memory_space<vmem>>, vector<32x256xbf16>,
    %c128_45 = arith.constant 128 : index
    %c0_46 = arith.constant 0 : index
    %99 = vector.load %arg12[%c128_45, %c0_46] : memref<288x256xbf16, #tpu.memory_space<vmem>>, vector<32x256xbf16>
    tpu.vector_store %arg12[%c128_45, %c0_46], %70 {strides = array<i32>} : memref<288x256xbf16, #tpu.memory_space<vmem>>, vector<32x256xbf16>,
    %100 = vector.extract_strided_slice %70 {offsets = [0, 1], sizes = [32, 255], strides = [1, 1]} : vector<32x256xbf16> to vector<32x255xbf16>
    %101 = vector.extract_strided_slice %70 {offsets = [0, 0], sizes = [32, 1], strides = [1, 1]} : vector<32x256xbf16> to vector<32x1xbf16>
    %102 = tpu.concatenate %100, %101 in 1 : vector<32x255xbf16>, vector<32x1xbf16> -> vector<32x256xbf16>
    %c5_47 = arith.constant 5 : index
    %c0_48 = arith.constant 0 : index
    %103 = vector.load %arg2[%c5_47, %c0_48] : memref<9x256xbf16, #tpu.memory_space<vmem>>, vector<1x256xbf16>
    %104 = vector.broadcast %103 : vector<1x256xbf16> to vector<32x256xbf16>
    %105 = arith.mulf %102, %104 : vector<32x256xbf16>
    %c160_49 = arith.constant 160 : index
    %c0_50 = arith.constant 0 : index
    %106 = vector.load %arg12[%c160_49, %c0_50] : memref<288x256xbf16, #tpu.memory_space<vmem>>, vector<32x256xbf16>
    tpu.vector_store %arg12[%c160_49, %c0_50], %105 {strides = array<i32>} : memref<288x256xbf16, #tpu.memory_space<vmem>>, vector<32x256xbf16>,
    %107 = vector.extract_strided_slice %70 {offsets = [0, 15], sizes = [32, 241], strides = [1, 1]} : vector<32x256xbf16> to vector<32x241xbf16>
    %108 = vector.extract_strided_slice %70 {offsets = [0, 0], sizes = [32, 15], strides = [1, 1]} : vector<32x256xbf16> to vector<32x15xbf16>
    %109 = tpu.concatenate %107, %108 in 1 : vector<32x241xbf16>, vector<32x15xbf16> -> vector<32x256xbf16>
    %c6_51 = arith.constant 6 : index
    %c0_52 = arith.constant 0 : index
    %110 = vector.load %arg2[%c6_51, %c0_52] : memref<9x256xbf16, #tpu.memory_space<vmem>>, vector<1x256xbf16>
    %111 = vector.broadcast %110 : vector<1x256xbf16> to vector<32x256xbf16>
    %112 = arith.mulf %109, %111 : vector<32x256xbf16>
    %c192_53 = arith.constant 192 : index
    %c0_54 = arith.constant 0 : index
    %113 = vector.load %arg12[%c192_53, %c0_54] : memref<288x256xbf16, #tpu.memory_space<vmem>>, vector<32x256xbf16>
    tpu.vector_store %arg12[%c192_53, %c0_54], %112 {strides = array<i32>} : memref<288x256xbf16, #tpu.memory_space<vmem>>, vector<32x256xbf16>,
    %114 = vector.extract_strided_slice %70 {offsets = [0, 16], sizes = [32, 240], strides = [1, 1]} : vector<32x256xbf16> to vector<32x240xbf16>
    %115 = vector.extract_strided_slice %70 {offsets = [0, 0], sizes = [32, 16], strides = [1, 1]} : vector<32x256xbf16> to vector<32x16xbf16>
    %116 = tpu.concatenate %114, %115 in 1 : vector<32x240xbf16>, vector<32x16xbf16> -> vector<32x256xbf16>
    %c7_55 = arith.constant 7 : index
    %c0_56 = arith.constant 0 : index
    %117 = vector.load %arg2[%c7_55, %c0_56] : memref<9x256xbf16, #tpu.memory_space<vmem>>, vector<1x256xbf16>
    %118 = vector.broadcast %117 : vector<1x256xbf16> to vector<32x256xbf16>
    %119 = arith.mulf %116, %118 : vector<32x256xbf16>
    %c224_57 = arith.constant 224 : index
    %c0_58 = arith.constant 0 : index
    %120 = vector.load %arg12[%c224_57, %c0_58] : memref<288x256xbf16, #tpu.memory_space<vmem>>, vector<32x256xbf16>
    tpu.vector_store %arg12[%c224_57, %c0_58], %119 {strides = array<i32>} : memref<288x256xbf16, #tpu.memory_space<vmem>>, vector<32x256xbf16>,
    %121 = vector.extract_strided_slice %70 {offsets = [0, 17], sizes = [32, 239], strides = [1, 1]} : vector<32x256xbf16> to vector<32x239xbf16>
    %122 = vector.extract_strided_slice %70 {offsets = [0, 0], sizes = [32, 17], strides = [1, 1]} : vector<32x256xbf16> to vector<32x17xbf16>
    %123 = tpu.concatenate %121, %122 in 1 : vector<32x239xbf16>, vector<32x17xbf16> -> vector<32x256xbf16>
    %c8_59 = arith.constant 8 : index
    %c0_60 = arith.constant 0 : index
    %124 = vector.load %arg2[%c8_59, %c0_60] : memref<9x256xbf16, #tpu.memory_space<vmem>>, vector<1x256xbf16>
    %125 = vector.broadcast %124 : vector<1x256xbf16> to vector<32x256xbf16>
    %126 = arith.mulf %123, %125 : vector<32x256xbf16>
    %c256_61 = arith.constant 256 : index
    %c0_62 = arith.constant 0 : index
    %127 = vector.load %arg12[%c256_61, %c0_62] : memref<288x256xbf16, #tpu.memory_space<vmem>>, vector<32x256xbf16>
    tpu.vector_store %arg12[%c256_61, %c0_62], %126 {strides = array<i32>} : memref<288x256xbf16, #tpu.memory_space<vmem>>, vector<32x256xbf16>,
    %c0_63 = arith.constant 0 : index
    %c0_64 = arith.constant 0 : index
    %128 = vector.load %arg6[%c0_63, %c0_64] : memref<32x288xbf16, #tpu.memory_space<vmem>>, vector<32x288xbf16>
    %c0_65 = arith.constant 0 : index
    %c0_66 = arith.constant 0 : index
    %129 = vector.load %arg12[%c0_65, %c0_66] : memref<288x256xbf16, #tpu.memory_space<vmem>>, vector<288x256xbf16>
    %cst_67 = arith.constant dense<0.000000e+00> : vector<32x256xf32>
    %130 = tpu.matmul %128, %129, %cst_67 {dimension_numbers = #tpu.dot_dimension_numbers<[1], [0], [0], [1], [0, 0, 1, 1], [], []>} : vector<32x288xbf16>, vector<288x256xbf16>, vector<32x256xf32> -> vector<32x256xf32>
    %c0_68 = arith.constant 0 : index
    %c0_69 = arith.constant 0 : index
    %131 = vector.load %arg7[%c0_68, %c0_69] : memref<32x1xf32, #tpu.memory_space<vmem>>, vector<32x1xf32>
    %132 = vector.broadcast %131 : vector<32x1xf32> to vector<32x256xf32>
    %133 = arith.mulf %130, %132 : vector<32x256xf32>
    %c0_70 = arith.constant 0 : index
    %c0_71 = arith.constant 0 : index
    %134 = vector.load %arg8[%c0_70, %c0_71] : memref<32x1xf32, #tpu.memory_space<vmem>>, vector<32x1xf32>
    %135 = vector.broadcast %134 : vector<32x1xf32> to vector<32x256xf32>
    %136 = arith.addf %133, %135 : vector<32x256xf32>
    %cst_72 = arith.constant dense<0.000000e+00> : vector<32xf32>
    %137 = vector.multi_reduction <add>, %136, %cst_72 [1] : vector<32x256xf32> to vector<32xf32>
    %138 = vector.shape_cast %137 : vector<32xf32> to vector<32x1xf32>
    %cst_73 = arith.constant 2.560000e+02 : f32
    %139 = vector.broadcast %cst_73 : f32 to vector<32x1xf32>
    %140 = arith.divf %138, %139 : vector<32x1xf32>
    %c0_74 = arith.constant 0 : index
    %c0_75 = arith.constant 0 : index
    %141 = vector.load %arg9[%c0_74, %c0_75] : memref<32x2xf32, #tpu.memory_space<vmem>>, vector<32x2xf32>
    %142 = vector.broadcast %140 : vector<32x1xf32> to vector<32x2xf32>
    %143 = arith.mulf %141, %142 : vector<32x2xf32>
    %cst_76 = arith.constant dense<0.000000e+00> : vector<2xf32>
    %144 = vector.multi_reduction <add>, %143, %cst_76 [0] : vector<32x2xf32> to vector<2xf32>
    %145 = vector.shape_cast %144 : vector<2xf32> to vector<1x2xf32>
    %cst_77 = arith.constant 0.000000e+00 : f32
    %146 = vector.broadcast %cst_77 : f32 to vector<1x2xf32>
    %147 = arith.maximumf %145, %146 : vector<1x2xf32>
    %c0_78 = arith.constant 0 : index
    %c0_79 = arith.constant 0 : index
    %148 = vector.load %arg10[%c0_78, %c0_79] : memref<32x2xf32, #tpu.memory_space<vmem>>, vector<32x2xf32>
    %149 = vector.broadcast %147 : vector<1x2xf32> to vector<32x2xf32>
    %150 = arith.mulf %148, %149 : vector<32x2xf32>
    %cst_80 = arith.constant dense<0.000000e+00> : vector<32xf32>
    %151 = vector.multi_reduction <add>, %150, %cst_80 [1] : vector<32x2xf32> to vector<32xf32>
    %152 = vector.shape_cast %151 : vector<32xf32> to vector<32x1xf32>
    %153 = arith.negf %152 : vector<32x1xf32>
    %154 = math.exp %153 : vector<32x1xf32>
    %cst_81 = arith.constant 1.000000e+00 : f32
    %155 = vector.broadcast %cst_81 : f32 to vector<32x1xf32>
    %156 = arith.addf %155, %154 : vector<32x1xf32>
    %157 = arith.divf %155, %156 : vector<32x1xf32>
    %158 = vector.broadcast %157 : vector<32x1xf32> to vector<32x256xf32>
    %159 = arith.mulf %136, %158 : vector<32x256xf32>
    %c0_82 = arith.constant 0 : index
    %c0_83 = arith.constant 0 : index
    %160 = vector.load %arg1[%c0_82, %c0_83] : memref<32x256xf32, #tpu.memory_space<vmem>>, vector<32x256xf32>
    %161 = arith.addf %159, %160 : vector<32x256xf32>
    %cst_84 = arith.constant 0.000000e+00 : f32
    %162 = vector.broadcast %cst_84 : f32 to vector<32x256xf32>
    %163 = arith.maximumf %161, %162 : vector<32x256xf32>
    %c0_85 = arith.constant 0 : index
    %c0_86 = arith.constant 0 : index
    %164 = vector.load %arg11[%c0_85, %c0_86] : memref<32x256xf32, #tpu.memory_space<vmem>>, vector<32x256xf32>
    tpu.vector_store %arg11[%c0_85, %c0_86], %163 {strides = array<i32>} : memref<32x256xf32, #tpu.memory_space<vmem>>, vector<32x256xf32>,
    return
  }
  func.func @transform_0(%arg0: i32) -> (i32, i32) {
    %c0_i32 = arith.constant 0 : i32
    %c0_i32_0 = arith.constant 0 : i32
    return %c0_i32, %arg0 : i32, i32
  }
  func.func @transform_1(%arg0: i32) -> (i32, i32) {
    %c0_i32 = arith.constant 0 : i32
    %c0_i32_0 = arith.constant 0 : i32
    %c0_i32_1 = arith.constant 0 : i32
    return %c0_i32, %c0_i32_0 : i32, i32
  }
  func.func @transform_2(%arg0: i32) -> (i32, i32) {
    %c0_i32 = arith.constant 0 : i32
    %c0_i32_0 = arith.constant 0 : i32
    %c0_i32_1 = arith.constant 0 : i32
    return %c0_i32, %c0_i32_0 : i32, i32
  }
  func.func @transform_3(%arg0: i32) -> (i32, i32) {
    %c0_i32 = arith.constant 0 : i32
    %c0_i32_0 = arith.constant 0 : i32
    %c0_i32_1 = arith.constant 0 : i32
    return %c0_i32, %c0_i32_0 : i32, i32
  }
  func.func @transform_4(%arg0: i32) -> (i32, i32) {
    %c0_i32 = arith.constant 0 : i32
    %c0_i32_0 = arith.constant 0 : i32
    %c0_i32_1 = arith.constant 0 : i32
    return %c0_i32, %c0_i32_0 : i32, i32
  }
  func.func @transform_5(%arg0: i32) -> (i32, i32) {
    %c0_i32 = arith.constant 0 : i32
    %c0_i32_0 = arith.constant 0 : i32
    %c0_i32_1 = arith.constant 0 : i32
    return %c0_i32, %c0_i32_0 : i32, i32
  }
  func.func @transform_6(%arg0: i32) -> (i32, i32) {
    %c0_i32 = arith.constant 0 : i32
    %c0_i32_0 = arith.constant 0 : i32
    %c0_i32_1 = arith.constant 0 : i32
    return %c0_i32, %c0_i32_0 : i32, i32
  }
  func.func @transform_7(%arg0: i32) -> (i32, i32) {
    %c0_i32 = arith.constant 0 : i32
    %c0_i32_0 = arith.constant 0 : i32
    %c0_i32_1 = arith.constant 0 : i32
    return %c0_i32, %c0_i32_0 : i32, i32
  }
  func.func @transform_8(%arg0: i32) -> (i32, i32) {
    %c0_i32 = arith.constant 0 : i32
    %c0_i32_0 = arith.constant 0 : i32
    %c0_i32_1 = arith.constant 0 : i32
    return %c0_i32, %c0_i32_0 : i32, i32
  }
  func.func @transform_9(%arg0: i32) -> (i32, i32) {
    %c0_i32 = arith.constant 0 : i32
    %c0_i32_0 = arith.constant 0 : i32
    %c0_i32_1 = arith.constant 0 : i32
    return %c0_i32, %c0_i32_0 : i32, i32
  }
  func.func @transform_10(%arg0: i32) -> (i32, i32) {
    %c0_i32 = arith.constant 0 : i32
    %c0_i32_0 = arith.constant 0 : i32
    return %c0_i32, %arg0 : i32, i32
  }
}

</mosaic_0001>

<llo_original>
// kernel: tpu_custom_call.1
$region0: #{tpu_custom_call.1}
  #allocation0 [shape = 'u32[]', space=smem, size = 0x4, offset = 0x4, fixed_abs, tag = 'smem constant byte address 0x4 - core index']
  #allocation1 [shape = 'u32[72,128]{1,0:T(1,128)}', space=vmem, size = 0x9000, scoped, tag = 'internal scratch']
  #allocation2 [shape = 'bf16[288,256]{1,0:T(8,128)(2,1)}', space=vmem, size = 0x24000, scoped, tag = 'scratch operand']
  %s0 = inlined_call_operand.hbm [shape: f32[32,512], index: 0, kind: input, shape index: {}]
  %s1 = inlined_call_operand.vmem [shape: bf16[9,256], index: 1, kind: input, shape index: {}]
  %s2 = inlined_call_operand.vmem [shape: bf16[32,288], index: 2, kind: input, shape index: {}]
  %s3 = inlined_call_operand.vmem [shape: f32[32,1], index: 3, kind: input, shape index: {}]
  %s4 = inlined_call_operand.vmem [shape: f32[32,1], index: 4, kind: input, shape index: {}]
  %s5 = inlined_call_operand.vmem [shape: bf16[32,288], index: 5, kind: input, shape index: {}]
  %s6 = inlined_call_operand.vmem [shape: f32[32,1], index: 6, kind: input, shape index: {}]
  %s7 = inlined_call_operand.vmem [shape: f32[32,1], index: 7, kind: input, shape index: {}]
  %s8 = inlined_call_operand.vmem [shape: f32[32,2], index: 8, kind: input, shape index: {}]
  %s9 = inlined_call_operand.vmem [shape: f32[32,2], index: 9, kind: input, shape index: {}]
  %s10 = inlined_call_operand.hbm [shape: f32[32,512], index: 10, kind: output, shape index: {}]
  %s11 = sld [smem:[#allocation0]]
  $region77: #{tpu_custom_call.1} parent=0
    _
  %s13 = ssub.s32 1, %s11
  %s14 = scalar_select 0, %s13, %s11
  $region1: #{tpu_custom_call.1} parent=0
    #allocation3 [shape = 'u8[65536]{0}', space=vmem, size = 0x10000, scoped, tag = 'input window, operand 0']
    #allocation4 [shape = 's32[2]{0}', space=sflag, size = 0x8, scoped, tag = 'scoped memory for tpu_custom_call.1']
    #allocation5 [shape = 's32[2]{0}', space=sflag, size = 0x8, scoped, tag = 'scoped memory for tpu_custom_call.1']
    #allocation6 [shape = 'u8[65536]{0}', space=vmem, size = 0x10000, scoped, tag = 'output window, operand 0']
    %15 = vsyncpa [#allocation4], 0
    %s16 = scalar_lea.sflag [#allocation4], 1
    %17 = vsyncpa %s16, 0
    %18 = vsyncpa [#allocation5], 0
    %s19 = scalar_lea.sflag [#allocation5], 1
    %20 = vsyncpa %s19, 0
    loop: start=0, step=1, limit=4
    $region2: #{tpu_custom_call.1} parent=1 // loop_pre_header
      _
    $region3: #{tpu_custom_call.1} parent=1 // loop_header
      %s22 = sphi 0, %s26
      %p23 = scmp.ge.s32.totalorder %s22, 4
      %s32 = sphi 0, %s34
      %s35 = sphi 0, %s32
      %s36 = sphi 0, %s35
      %s52 = sphi 0, %s36
      %s56 = sphi 0, %s56
      %s58 = sphi 0, %s56
      %s59 = sphi 0, %s58
      %s73 = sphi 0, %s59
      %s77 = sphi 0, %s77
      %s79 = sphi 0, %s77
      %s80 = sphi 0, %s79
      %s94 = sphi 0, %s80
      %s98 = sphi 0, %s98
      %s100 = sphi 0, %s98
      %s101 = sphi 0, %s100
      %s115 = sphi 0, %s101
      %s119 = sphi 0, %s119
      %s121 = sphi 0, %s119
      %s122 = sphi 0, %s121
      %s136 = sphi 0, %s122
      %s140 = sphi 0, %s140
      %s142 = sphi 0, %s140
      %s143 = sphi 0, %s142
      %s157 = sphi 0, %s143
      %s161 = sphi 0, %s161
      %s163 = sphi 0, %s161
      %s164 = sphi 0, %s163
      %s178 = sphi 0, %s164
      %s182 = sphi 0, %s182
      %s184 = sphi 0, %s182
      %s185 = sphi 0, %s184
      %s199 = sphi 0, %s185
      %s203 = sphi 0, %s203
      %s205 = sphi 0, %s203
      %s206 = sphi 0, %s205
      %s220 = sphi 0, %s206
      %s224 = sphi 0, %s224
      %s226 = sphi 0, %s224
      %s227 = sphi 0, %s226
      %s241 = sphi 0, %s227
      %s247 = sphi 0, %s249
      %s250 = sphi 0, %s247
      %s251 = sphi 0, %s250
      %s267 = sphi 0, %s251
    $region4: #{tpu_custom_call.1} parent=1 // loop_header_branch
      %25 = sbr.rel (%p23) target = $region8
    $region5: #{tpu_custom_call.1} parent=1 // loop_body
      %s27 = ssub.s32 %s22, 1
      %s28 = ssub.s32 %s22, 2
      %s29 = sadd.s32 %s22, 1
      %s30 = ssub.s32 %s22, %s29
      %p31 = scmp.eq.s32.totalorder %s30, 0
      %s33 = sadd.s32 %s32, 1
      %s34 = scalar_select %p31, %s32, %s33
      %p37 = pneg %p31
      %p38 = scmp.eq.s32.totalorder %s22, 1
      %p39 = por %p37, %p38
      %p40 = scmp.ne.s32.totalorder %s32, %s35
      %p41 = scmp.eq.s32.totalorder %s22, 0
      %p42 = por %p40, %p41
      %p43 = scmp.ne.s32.totalorder %s32, %s35
      %p44 = scmp.eq.s32.totalorder %s27, 1
      %p45 = por %p43, %p44
      %p46 = scmp.ne.s32.totalorder %s35, %s36
      %p47 = scmp.eq.s32.totalorder %s27, 0
      %p48 = por %p46, %p47
      %p49 = scmp.ne.s32.totalorder %s35, %s36
      %p50 = scmp.eq.s32.totalorder %s28, 1
      %p51 = por %p49, %p50
      %p53 = scmp.ne.s32.totalorder %s36, %s52
      %p54 = scmp.eq.s32.totalorder %s28, 0
      %p55 = por %p53, %p54
      %s57 = sadd.s32 %s56, 1
      %p60 = scmp.eq.s32.totalorder %s22, 1
      %p61 = scmp.ne.s32.totalorder %s56, %s58
      %p62 = scmp.eq.s32.totalorder %s22, 0
      %p63 = por %p61, %p62
      %p64 = scmp.ne.s32.totalorder %s56, %s58
      %p65 = scmp.eq.s32.totalorder %s27, 1
      %p66 = por %p64, %p65
      %p67 = scmp.ne.s32.totalorder %s58, %s59
      %p68 = scmp.eq.s32.totalorder %s27, 0
      %p69 = por %p67, %p68
      %p70 = scmp.ne.s32.totalorder %s58, %s59
      %p71 = scmp.eq.s32.totalorder %s28, 1
      %p72 = por %p70, %p71
      %p74 = scmp.ne.s32.totalorder %s59, %s73
      %p75 = scmp.eq.s32.totalorder %s28, 0
      %p76 = por %p74, %p75
      %s78 = sadd.s32 %s77, 1
      %p81 = scmp.eq.s32.totalorder %s22, 1
      %p82 = scmp.ne.s32.totalorder %s77, %s79
      %p83 = scmp.eq.s32.totalorder %s22, 0
      %p84 = por %p82, %p83
      %p85 = scmp.ne.s32.totalorder %s77, %s79
      %p86 = scmp.eq.s32.totalorder %s27, 1
      %p87 = por %p85, %p86
      %p88 = scmp.ne.s32.totalorder %s79, %s80
      %p89 = scmp.eq.s32.totalorder %s27, 0
      %p90 = por %p88, %p89
      %p91 = scmp.ne.s32.totalorder %s79, %s80
      %p92 = scmp.eq.s32.totalorder %s28, 1
      %p93 = por %p91, %p92
      %p95 = scmp.ne.s32.totalorder %s80, %s94
      %p96 = scmp.eq.s32.totalorder %s28, 0
      %p97 = por %p95, %p96
      %s99 = sadd.s32 %s98, 1
      %p102 = scmp.eq.s32.totalorder %s22, 1
      %p103 = scmp.ne.s32.totalorder %s98, %s100
      %p104 = scmp.eq.s32.totalorder %s22, 0
      %p105 = por %p103, %p104
      %p106 = scmp.ne.s32.totalorder %s98, %s100
      %p107 = scmp.eq.s32.totalorder %s27, 1
      %p108 = por %p106, %p107
      %p109 = scmp.ne.s32.totalorder %s100, %s101
      %p110 = scmp.eq.s32.totalorder %s27, 0
      %p111 = por %p109, %p110
      %p112 = scmp.ne.s32.totalorder %s100, %s101
      %p113 = scmp.eq.s32.totalorder %s28, 1
      %p114 = por %p112, %p113
      %p116 = scmp.ne.s32.totalorder %s101, %s115
      %p117 = scmp.eq.s32.totalorder %s28, 0
      %p118 = por %p116, %p117
      %s120 = sadd.s32 %s119, 1
      %p123 = scmp.eq.s32.totalorder %s22, 1
      %p124 = scmp.ne.s32.totalorder %s119, %s121
      %p125 = scmp.eq.s32.totalorder %s22, 0
      %p126 = por %p124, %p125
      %p127 = scmp.ne.s32.totalorder %s119, %s121
      %p128 = scmp.eq.s32.totalorder %s27, 1
      %p129 = por %p127, %p128
      %p130 = scmp.ne.s32.totalorder %s121, %s122
      %p131 = scmp.eq.s32.totalorder %s27, 0
      %p132 = por %p130, %p131
      %p133 = scmp.ne.s32.totalorder %s121, %s122
      %p134 = scmp.eq.s32.totalorder %s28, 1
      %p135 = por %p133, %p134
      %p137 = scmp.ne.s32.totalorder %s122, %s136
      %p138 = scmp.eq.s32.totalorder %s28, 0
      %p139 = por %p137, %p138
      %s141 = sadd.s32 %s140, 1
      %p144 = scmp.eq.s32.totalorder %s22, 1
      %p145 = scmp.ne.s32.totalorder %s140, %s142
      %p146 = scmp.eq.s32.totalorder %s22, 0
      %p147 = por %p145, %p146
      %p148 = scmp.ne.s32.totalorder %s140, %s142
      %p149 = scmp.eq.s32.totalorder %s27, 1
      %p150 = por %p148, %p149
      %p151 = scmp.ne.s32.totalorder %s142, %s143
      %p152 = scmp.eq.s32.totalorder %s27, 0
      %p153 = por %p151, %p152
      %p154 = scmp.ne.s32.totalorder %s142, %s143
      %p155 = scmp.eq.s32.totalorder %s28, 1
      %p156 = por %p154, %p155
      %p158 = scmp.ne.s32.totalorder %s143, %s157
      %p159 = scmp.eq.s32.totalorder %s28, 0
      %p160 = por %p158, %p159
      %s162 = sadd.s32 %s161, 1
      %p165 = scmp.eq.s32.totalorder %s22, 1
      %p166 = scmp.ne.s32.totalorder %s161, %s163
      %p167 = scmp.eq.s32.totalorder %s22, 0
      %p168 = por %p166, %p167
      %p169 = scmp.ne.s32.totalorder %s161, %s163
      %p170 = scmp.eq.s32.totalorder %s27, 1
      %p171 = por %p169, %p170
      %p172 = scmp.ne.s32.totalorder %s163, %s164
      %p173 = scmp.eq.s32.totalorder %s27, 0
      %p174 = por %p172, %p173
      %p175 = scmp.ne.s32.totalorder %s163, %s164
      %p176 = scmp.eq.s32.totalorder %s28, 1
      %p177 = por %p175, %p176
      %p179 = scmp.ne.s32.totalorder %s164, %s178
      %p180 = scmp.eq.s32.totalorder %s28, 0
      %p181 = por %p179, %p180
      %s183 = sadd.s32 %s182, 1
      %p186 = scmp.eq.s32.totalorder %s22, 1
      %p187 = scmp.ne.s32.totalorder %s182, %s184
      %p188 = scmp.eq.s32.totalorder %s22, 0
      %p189 = por %p187, %p188
      %p190 = scmp.ne.s32.totalorder %s182, %s184
      %p191 = scmp.eq.s32.totalorder %s27, 1
      %p192 = por %p190, %p191
      %p193 = scmp.ne.s32.totalorder %s184, %s185
      %p194 = scmp.eq.s32.totalorder %s27, 0
      %p195 = por %p193, %p194
      %p196 = scmp.ne.s32.totalorder %s184, %s185
      %p197 = scmp.eq.s32.totalorder %s28, 1
      %p198 = por %p196, %p197
      %p200 = scmp.ne.s32.totalorder %s185, %s199
      %p201 = scmp.eq.s32.totalorder %s28, 0
      %p202 = por %p200, %p201
      %s204 = sadd.s32 %s203, 1
      %p207 = scmp.eq.s32.totalorder %s22, 1
      %p208 = scmp.ne.s32.totalorder %s203, %s205
      %p209 = scmp.eq.s32.totalorder %s22, 0
      %p210 = por %p208, %p209
      %p211 = scmp.ne.s32.totalorder %s203, %s205
      %p212 = scmp.eq.s32.totalorder %s27, 1
      %p213 = por %p211, %p212
      %p214 = scmp.ne.s32.totalorder %s205, %s206
      %p215 = scmp.eq.s32.totalorder %s27, 0
      %p216 = por %p214, %p215
      %p217 = scmp.ne.s32.totalorder %s205, %s206
      %p218 = scmp.eq.s32.totalorder %s28, 1
      %p219 = por %p217, %p218
      %p221 = scmp.ne.s32.totalorder %s206, %s220
      %p222 = scmp.eq.s32.totalorder %s28, 0
      %p223 = por %p221, %p222
      %s225 = sadd.s32 %s224, 1
      %p228 = scmp.eq.s32.totalorder %s22, 1
      %p229 = scmp.ne.s32.totalorder %s224, %s226
      %p230 = scmp.eq.s32.totalorder %s22, 0
      %p231 = por %p229, %p230
      %p232 = scmp.ne.s32.totalorder %s224, %s226
      %p233 = scmp.eq.s32.totalorder %s27, 1
      %p234 = por %p232, %p233
      %p235 = scmp.ne.s32.totalorder %s226, %s227
      %p236 = scmp.eq.s32.totalorder %s27, 0
      %p237 = por %p235, %p236
      %p238 = scmp.ne.s32.totalorder %s226, %s227
      %p239 = scmp.eq.s32.totalorder %s28, 1
      %p240 = por %p238, %p239
      %p242 = scmp.ne.s32.totalorder %s227, %s241
      %p243 = scmp.eq.s32.totalorder %s28, 0
      %p244 = por %p242, %p243
      %s245 = ssub.s32 %s22, %s29
      %p246 = scmp.eq.s32.totalorder %s245, 0
      %s248 = sadd.s32 %s247, 1
      %s249 = scalar_select %p246, %s247, %s248
      %p252 = pneg %p246
      %p253 = scmp.eq.s32.totalorder %s22, 1
      %p254 = por %p252, %p253
      %p255 = scmp.ne.s32.totalorder %s247, %s250
      %p256 = scmp.eq.s32.totalorder %s22, 0
      %p257 = por %p255, %p256
      %p258 = scmp.ne.s32.totalorder %s247, %s250
      %p259 = scmp.eq.s32.totalorder %s27, 1
      %p260 = por %p258, %p259
      %p261 = scmp.ne.s32.totalorder %s250, %s251
      %p262 = scmp.eq.s32.totalorder %s27, 0
      %p263 = por %p261, %p262
      %p264 = scmp.ne.s32.totalorder %s250, %s251
      %p265 = scmp.eq.s32.totalorder %s28, 1
      %p266 = por %p264, %p265
      %p268 = scmp.ne.s32.totalorder %s251, %s267
      %p269 = scmp.eq.s32.totalorder %s28, 0
      %p270 = por %p268, %p269
      %p271 = scmp.le.s32.totalorder 1, %s22
      %p272 = scmp.lt.s32.totalorder %s22, 3
      %p273 = pnand %p271, %p272
      %p274 = pneg %p273
      // Predicated region
      $region9: #{tpu_custom_call.1} parent=5 // pred_check
        _
      $region10: #{tpu_custom_call.1} parent=5 // pred_check_branch
        %276 = sbr.rel (%p273) target = $region12
      $region11: #{tpu_custom_call.1} parent=5 // pred_region
        %s277 = ssub.s32 %s22, 1
        // Predicated region
        $region13: #{tpu_custom_call.1} parent=11 // pred_check
          %p278 = pneg %p69
        $region14: #{tpu_custom_call.1} parent=11 // pred_check_branch
          %280 = sbr.rel (%p278) target = $region16
        $region15: #{tpu_custom_call.1} parent=11 // pred_region
          _
        $region16: #{tpu_custom_call.1} parent=11 // pred_fallthru
          _
        // Predicated region
        $region17: #{tpu_custom_call.1} parent=11 // pred_check
          %p281 = pneg %p90
        $region18: #{tpu_custom_call.1} parent=11 // pred_check_branch
          %283 = sbr.rel (%p281) target = $region20
        $region19: #{tpu_custom_call.1} parent=11 // pred_region
          _
        $region20: #{tpu_custom_call.1} parent=11 // pred_fallthru
          _
        // Predicated region
        $region21: #{tpu_custom_call.1} parent=11 // pred_check
          %p284 = pneg %p111
        $region22: #{tpu_custom_call.1} parent=11 // pred_check_branch
          %286 = sbr.rel (%p284) target = $region24
        $region23: #{tpu_custom_call.1} parent=11 // pred_region
          _
        $region24: #{tpu_custom_call.1} parent=11 // pred_fallthru
          _
        // Predicated region
        $region25: #{tpu_custom_call.1} parent=11 // pred_check
          %p287 = pneg %p132
        $region26: #{tpu_custom_call.1} parent=11 // pred_check_branch
          %289 = sbr.rel (%p287) target = $region28
        $region27: #{tpu_custom_call.1} parent=11 // pred_region
          _
        $region28: #{tpu_custom_call.1} parent=11 // pred_fallthru
          _
        // Predicated region
        $region29: #{tpu_custom_call.1} parent=11 // pred_check
          %p290 = pneg %p153
        $region30: #{tpu_custom_call.1} parent=11 // pred_check_branch
          %292 = sbr.rel (%p290) target = $region32
        $region31: #{tpu_custom_call.1} parent=11 // pred_region
          _
        $region32: #{tpu_custom_call.1} parent=11 // pred_fallthru
          _
        // Predicated region
        $region33: #{tpu_custom_call.1} parent=11 // pred_check
          %p293 = pneg %p174
        $region34: #{tpu_custom_call.1} parent=11 // pred_check_branch
          %295 = sbr.rel (%p293) target = $region36
        $region35: #{tpu_custom_call.1} parent=11 // pred_region
          _
        $region36: #{tpu_custom_call.1} parent=11 // pred_fallthru
          _
        // Predicated region
        $region37: #{tpu_custom_call.1} parent=11 // pred_check
          %p296 = pneg %p195
        $region38: #{tpu_custom_call.1} parent=11 // pred_check_branch
          %298 = sbr.rel (%p296) target = $region40
        $region39: #{tpu_custom_call.1} parent=11 // pred_region
          _
        $region40: #{tpu_custom_call.1} parent=11 // pred_fallthru
          _
        // Predicated region
        $region41: #{tpu_custom_call.1} parent=11 // pred_check
          %p299 = pneg %p216
        $region42: #{tpu_custom_call.1} parent=11 // pred_check_branch
          %301 = sbr.rel (%p299) target = $region44
        $region43: #{tpu_custom_call.1} parent=11 // pred_region
          _
        $region44: #{tpu_custom_call.1} parent=11 // pred_fallthru
          _
        // Predicated region
        $region45: #{tpu_custom_call.1} parent=11 // pred_check
          %p302 = pneg %p237
        $region46: #{tpu_custom_call.1} parent=11 // pred_check_branch
          %304 = sbr.rel (%p302) target = $region48
        $region47: #{tpu_custom_call.1} parent=11 // pred_region
          _
        $region48: #{tpu_custom_call.1} parent=11 // pred_fallthru
          _
      $region12: #{tpu_custom_call.1} parent=5 // pred_fallthru
        _
      %p305 = scmp.lt.s32.totalorder %s22, 2
      // Predicated region
      $region49: #{tpu_custom_call.1} parent=5 // pred_check
        %p306 = pneg %p305
      $region50: #{tpu_custom_call.1} parent=5 // pred_check_branch
        %308 = sbr.rel (%p306) target = $region52
      $region51: #{tpu_custom_call.1} parent=5 // pred_region
        // Predicated region
        $region53: #{tpu_custom_call.1} parent=51 // pred_check
          %p309 = pneg %p42
        $region54: #{tpu_custom_call.1} parent=51 // pred_check_branch
          %311 = sbr.rel (%p309) target = $region56
        $region55: #{tpu_custom_call.1} parent=51 // pred_region
          %s312 = sand.u32 %s32, 1
          %s313 = scalar_lea.sflag [#allocation4], %s312
          %s314 = sand.u32 %s32, 1
          %s315 = smul.addr %s314, 64
          %s316 = scalar_lea.vmem [#allocation3], %s315
          %s317 = smul.u32 2, %s22
          %319 = vsyncadd %s313, 0
          %s320 = smul.addr %s317, 8
          %s321 = scalar_lea.hbm %s0, %s320
          %s322 = sshll.u32 %s321, 4
          %s323 = int_to_ptr.hbm [resolvable:$true] %s322
          %s324 = sshll.u32 %s316, 4
          %s325 = int_to_ptr.vmem [resolvable:$true] %s324
          %330 = dma.hbm_to_vmem [thread:$0]  %s323, 1024, %s325, %s313, 512, 256, 16
        $region56: #{tpu_custom_call.1} parent=51 // pred_fallthru
          _
      $region52: #{tpu_custom_call.1} parent=5 // pred_fallthru
        _
      %p331 = scmp.le.s32.totalorder 1, %s22
      %p332 = scmp.lt.s32.totalorder %s22, 3
      %p333 = pnand %p331, %p332
      %p334 = pneg %p333
      // Predicated region
      $region57: #{tpu_custom_call.1} parent=5 // pred_check
        _
      $region58: #{tpu_custom_call.1} parent=5 // pred_check_branch
        %336 = sbr.rel (%p333) target = $region60
      $region59: #{tpu_custom_call.1} parent=5 // pred_region
        %s337 = ssub.s32 %s22, 1
        %s338 = sand.u32 %s35, 1
        %s339 = scalar_lea.sflag [#allocation4], %s338
        %s340 = sand.u32 %s35, 1
        %s341 = smul.addr %s340, 64
        %s342 = scalar_lea.vmem [#allocation3], %s341
        // Predicated region
        $region61: #{tpu_custom_call.1} parent=59 // pred_check
          %p343 = pneg %p48
        $region62: #{tpu_custom_call.1} parent=59 // pred_check_branch
          %345 = sbr.rel (%p343) target = $region64
        $region63: #{tpu_custom_call.1} parent=59 // pred_region
          %347 = dma.done %s339, 1024
        $region64: #{tpu_custom_call.1} parent=59 // pred_fallthru
          _
        %s348 = sand.u32 %s35, 1
        %s349 = scalar_lea.sflag [#allocation4], %s348
        %s350 = sand.u32 %s35, 1
        %s351 = smul.addr %s350, 64
        %s352 = scalar_lea.vmem [#allocation3], %s351
        %p353 = pneg %p48
        %p354 = pneg %p45
        %p355 = pneg %p69
        %p356 = pneg %p66
        %p357 = pneg %p90
        %p358 = pneg %p87
        %p359 = pneg %p111
        %p360 = pneg %p108
        %p361 = pneg %p132
        %p362 = pneg %p129
        %p363 = pneg %p153
        %p364 = pneg %p150
        %p365 = pneg %p174
        %p366 = pneg %p171
        %p367 = pneg %p195
        %p368 = pneg %p192
        %p369 = pneg %p216
        %p370 = pneg %p213
        %p371 = pneg %p237
        %p372 = pneg %p234
        %p373 = pneg %p263
        %p374 = pneg %p260
        %s375 = sand.u32 %s250, 1
        %s376 = scalar_lea.sflag [#allocation5], %s375
        %s377 = sand.u32 %s250, 1
        %s378 = smul.addr %s377, 64
        %s379 = scalar_lea.vmem [#allocation6], %s378
        %s380 = smul.u32 2, %s27
        %s381 = smul.u32 2, %s27
        %v383 = vld [vmem:[%s342] sm:$0xff]
        %v384 = vld [vmem:[%s342 + $0x8] sm:$0xff]
        %v385 = vld [vmem:[%s342 + $0x10] sm:$0xff]
        %v386 = vld [vmem:[%s342 + $0x18] sm:$0xff]
        %v387 = vld [vmem:[%s342 + $0x20] sm:$0xff]
        %v388 = vld [vmem:[%s342 + $0x28] sm:$0xff]
        %v389 = vld [vmem:[%s342 + $0x30] sm:$0xff]
        %v390 = vld [vmem:[%s342 + $0x38] sm:$0xff]
        %v391 = vpack.c.bf16 %v384, %v383
        %v392 = vpack.c.bf16 %v386, %v385
        %v393 = vpack.c.bf16 %v388, %v387
        %v394 = vpack.c.bf16 %v390, %v389
        %v399 = vunpack.c.h.b16 %v391
        %v400 = vunpack.c.h.b16 %v392
        %v401 = vunpack.c.h.b16 %v393
        %v402 = vunpack.c.h.b16 %v394
        %v403 = vpack.c.b16 %v400, %v399
        %v404 = vpack.c.b16 %v402, %v401
        %405 = vrot.lane.b32.xlu0 %v403, 17
        %v406 = vpop.permute.xlu0 %405
        %407 = vrot.lane.b32.xlu0 %v404, 17
        %v408 = vpop.permute.xlu0 %407
        %v409 = vunpack.c.l.b16 %v391
        %v410 = vunpack.c.l.b16 %v392
        %v411 = vunpack.c.l.b16 %v393
        %v412 = vunpack.c.l.b16 %v394
        %v413 = vpack.c.b16 %v410, %v409
        %v414 = vpack.c.b16 %v412, %v411
        %415 = vrot.lane.b32.xlu0 %v413, 17
        %v416 = vpop.permute.xlu0 %415
        %417 = vrot.lane.b32.xlu0 %v414, 17
        %v418 = vpop.permute.xlu0 %417
        %vm419 = vcmask 138240
        %v420 = vsel %vm419, %v416, %v406
        %v421 = vsel %vm419, %v418, %v408
        %vm424 = vcmask 138240
        %v427 = vsel %vm424, %v406, %v416
        %v431 = vsel %vm424, %v408, %v418
        %v433 = vld [vmem:[%s1] sm:$0x11]
        %v435 = vunpack.c.l.b16 %v433
        %v436 = vunpack.c.h.b16 %v433
        %v437 = vpack.c.b16 %v435, %v435
        %v438 = vpack.c.b16 %v436, %v436
        %v440 = vpack.i.b16 %v437, %v437
        %v442 = vperm.slane %v440, 0
        %v444 = vpack.i.b16 %v438, %v438
        %v446 = vperm.slane %v444, 0
        %v447 = vunpack.c.l.bf16 %v427
        %v448 = vunpack.c.l.bf16 %v420
        %v449 = vunpack.c.h.bf16 %v427
        %v450 = vunpack.c.h.bf16 %v420
        %v451 = vunpack.c.l.bf16 %v431
        %v452 = vunpack.c.l.bf16 %v421
        %v453 = vunpack.c.h.bf16 %v431
        %v454 = vunpack.c.h.bf16 %v421
        %v455 = vunpack.c.l.bf16 %v442
        %v456 = vunpack.c.l.bf16 %v446
        %v457 = vmul.f32 %v447, %v455
        %v458 = vmul.f32 %v448, %v456
        %v459 = vmul.f32 %v449, %v455
        %v460 = vmul.f32 %v450, %v456
        %v461 = vmul.f32 %v451, %v455
        %v462 = vmul.f32 %v452, %v456
        %v463 = vmul.f32 %v453, %v455
        %v464 = vmul.f32 %v454, %v456
        %v465 = vpack.c.bf16 %v458, %v457
        %v466 = vpack.c.bf16 %v460, %v459
        %v467 = vpack.c.bf16 %v462, %v461
        %v468 = vpack.c.bf16 %v464, %v463
        %469 = vst [vmem:[#allocation2] sm:$0xff] %v465
        %470 = vst [vmem:[#allocation2 + $0x8] sm:$0xff] %v466
        %471 = vst [vmem:[#allocation2 + $0x10] sm:$0xff] %v467
        %472 = vst [vmem:[#allocation2 + $0x18] sm:$0xff] %v468
        %473 = vrot.lane.b32.xlu0 %v403, 16
        %v474 = vpop.permute.xlu0 %473
        %475 = vrot.lane.b32.xlu0 %v404, 16
        %v476 = vpop.permute.xlu0 %475
        %477 = vrot.lane.b32.xlu0 %v413, 16
        %v478 = vpop.permute.xlu0 %477
        %479 = vrot.lane.b32.xlu0 %v414, 16
        %v480 = vpop.permute.xlu0 %479
        %vm481 = vcmask 130048
        %v482 = vsel %vm481, %v478, %v474
        %v483 = vsel %vm481, %v480, %v476
        %vm486 = vcmask 130048
        %v489 = vsel %vm486, %v474, %v478
        %v493 = vsel %vm486, %v476, %v480
        %v495 = vld [vmem:[%s1] sm:$0x11]
        %v497 = vunpack.c.l.b16 %v495
        %v498 = vunpack.c.h.b16 %v495
        %v499 = vpack.c.b16 %v497, %v497
        %v500 = vpack.c.b16 %v498, %v498
        %v502 = vshrl.u32 %v499, 16
        %v503 = vpack.i.b16 %v502, %v502
        %v505 = vperm.slane %v503, 0
        %v507 = vshrl.u32 %v500, 16
        %v508 = vpack.i.b16 %v507, %v507
        %v510 = vperm.slane %v508, 0
        %v511 = vunpack.c.l.bf16 %v489
        %v512 = vunpack.c.l.bf16 %v482
        %v513 = vunpack.c.h.bf16 %v489
        %v514 = vunpack.c.h.bf16 %v482
        %v515 = vunpack.c.l.bf16 %v493
        %v516 = vunpack.c.l.bf16 %v483
        %v517 = vunpack.c.h.bf16 %v493
        %v518 = vunpack.c.h.bf16 %v483
        %v519 = vunpack.c.l.bf16 %v505
        %v520 = vunpack.c.l.bf16 %v510
        %v521 = vmul.f32 %v511, %v519
        %v522 = vmul.f32 %v512, %v520
        %v523 = vmul.f32 %v513, %v519
        %v524 = vmul.f32 %v514, %v520
        %v525 = vmul.f32 %v515, %v519
        %v526 = vmul.f32 %v516, %v520
        %v527 = vmul.f32 %v517, %v519
        %v528 = vmul.f32 %v518, %v520
        %v529 = vpack.c.bf16 %v522, %v521
        %v530 = vpack.c.bf16 %v524, %v523
        %v531 = vpack.c.bf16 %v526, %v525
        %v532 = vpack.c.bf16 %v528, %v527
        %533 = vst [vmem:[#allocation2 + $0x20] sm:$0xff] %v529
        %534 = vst [vmem:[#allocation2 + $0x28] sm:$0xff] %v530
        %535 = vst [vmem:[#allocation2 + $0x30] sm:$0xff] %v531
        %536 = vst [vmem:[#allocation2 + $0x38] sm:$0xff] %v532
        %537 = vrot.lane.b32.xlu0 %v403, 15
        %v538 = vpop.permute.xlu0 %537
        %539 = vrot.lane.b32.xlu0 %v404, 15
        %v540 = vpop.permute.xlu0 %539
        %541 = vrot.lane.b32.xlu0 %v413, 15
        %v542 = vpop.permute.xlu0 %541
        %543 = vrot.lane.b32.xlu0 %v414, 15
        %v544 = vpop.permute.xlu0 %543
        %vm545 = vcmask 121856
        %v546 = vsel %vm545, %v542, %v538
        %v547 = vsel %vm545, %v544, %v540
        %vm550 = vcmask 121856
        %v553 = vsel %vm550, %v538, %v542
        %v557 = vsel %vm550, %v540, %v544
        %v559 = vld [vmem:[%s1] sm:$0x22]
        %v561 = vunpack.c.l.b16 %v559
        %v562 = vunpack.c.h.b16 %v559
        %v563 = vpack.c.b16 %v561, %v561
        %v564 = vpack.c.b16 %v562, %v562
        %v566 = vpack.i.b16 %v563, %v563
        %v568 = vperm.slane %v566, 1
        %v570 = vpack.i.b16 %v564, %v564
        %v572 = vperm.slane %v570, 1
        %v573 = vunpack.c.l.bf16 %v553
        %v574 = vunpack.c.l.bf16 %v546
        %v575 = vunpack.c.h.bf16 %v553
        %v576 = vunpack.c.h.bf16 %v546
        %v577 = vunpack.c.l.bf16 %v557
        %v578 = vunpack.c.l.bf16 %v547
        %v579 = vunpack.c.h.bf16 %v557
        %v580 = vunpack.c.h.bf16 %v547
        %v581 = vunpack.c.l.bf16 %v568
        %v582 = vunpack.c.l.bf16 %v572
        %v583 = vmul.f32 %v573, %v581
        %v584 = vmul.f32 %v574, %v582
        %v585 = vmul.f32 %v575, %v581
        %v586 = vmul.f32 %v576, %v582
        %v587 = vmul.f32 %v577, %v581
        %v588 = vmul.f32 %v578, %v582
        %v589 = vmul.f32 %v579, %v581
        %v590 = vmul.f32 %v580, %v582
        %v591 = vpack.c.bf16 %v584, %v583
        %v592 = vpack.c.bf16 %v586, %v585
        %v593 = vpack.c.bf16 %v588, %v587
        %v594 = vpack.c.bf16 %v590, %v589
        %595 = vst [vmem:[#allocation2 + $0x40] sm:$0xff] %v591
        %596 = vst [vmem:[#allocation2 + $0x48] sm:$0xff] %v592
        %597 = vst [vmem:[#allocation2 + $0x50] sm:$0xff] %v593
        %598 = vst [vmem:[#allocation2 + $0x58] sm:$0xff] %v594
        %599 = vrot.lane.b32.xlu0 %v403, 1
        %v600 = vpop.permute.xlu0 %599
        %601 = vrot.lane.b32.xlu0 %v404, 1
        %v602 = vpop.permute.xlu0 %601
        %603 = vrot.lane.b32.xlu0 %v413, 1
        %v604 = vpop.permute.xlu0 %603
        %605 = vrot.lane.b32.xlu0 %v414, 1
        %v606 = vpop.permute.xlu0 %605
        %vm607 = vcmask 7168
        %v608 = vsel %vm607, %v604, %v600
        %v609 = vsel %vm607, %v606, %v602
        %vm612 = vcmask 7168
        %v615 = vsel %vm612, %v600, %v604
        %v619 = vsel %vm612, %v602, %v606
        %v621 = vld [vmem:[%s1] sm:$0x22]
        %v623 = vunpack.c.l.b16 %v621
        %v624 = vunpack.c.h.b16 %v621
        %v625 = vpack.c.b16 %v623, %v623
        %v626 = vpack.c.b16 %v624, %v624
        %v628 = vshrl.u32 %v625, 16
        %v629 = vpack.i.b16 %v628, %v628
        %v631 = vperm.slane %v629, 1
        %v633 = vshrl.u32 %v626, 16
        %v634 = vpack.i.b16 %v633, %v633
        %v636 = vperm.slane %v634, 1
        %v637 = vunpack.c.l.bf16 %v615
        %v638 = vunpack.c.l.bf16 %v608
        %v639 = vunpack.c.h.bf16 %v615
        %v640 = vunpack.c.h.bf16 %v608
        %v641 = vunpack.c.l.bf16 %v619
        %v642 = vunpack.c.l.bf16 %v609
        %v643 = vunpack.c.h.bf16 %v619
        %v644 = vunpack.c.h.bf16 %v609
        %v645 = vunpack.c.l.bf16 %v631
        %v646 = vunpack.c.l.bf16 %v636
        %v647 = vmul.f32 %v637, %v645
        %v648 = vmul.f32 %v638, %v646
        %v649 = vmul.f32 %v639, %v645
        %v650 = vmul.f32 %v640, %v646
        %v651 = vmul.f32 %v641, %v645
        %v652 = vmul.f32 %v642, %v646
        %v653 = vmul.f32 %v643, %v645
        %v654 = vmul.f32 %v644, %v646
        %v655 = vpack.c.bf16 %v648, %v647
        %v656 = vpack.c.bf16 %v650, %v649
        %v657 = vpack.c.bf16 %v652, %v651
        %v658 = vpack.c.bf16 %v654, %v653
        %659 = vst [vmem:[#allocation2 + $0x60] sm:$0xff] %v655
        %660 = vst [vmem:[#allocation2 + $0x68] sm:$0xff] %v656
        %661 = vst [vmem:[#allocation2 + $0x70] sm:$0xff] %v657
        %662 = vst [vmem:[#allocation2 + $0x78] sm:$0xff] %v658
        %663 = vst [vmem:[#allocation2 + $0x80] sm:$0xff] %v391
        %664 = vst [vmem:[#allocation2 + $0x88] sm:$0xff] %v392
        %665 = vst [vmem:[#allocation2 + $0x90] sm:$0xff] %v393
        %666 = vst [vmem:[#allocation2 + $0x98] sm:$0xff] %v394
        %667 = vrot.lane.b32.xlu0 %v413, 127
        %v668 = vpop.permute.xlu0 %667
        %669 = vrot.lane.b32.xlu0 %v403, 127
        %v670 = vpop.permute.xlu0 %669
        %671 = vrot.lane.b32.xlu0 %v414, 127
        %v672 = vpop.permute.xlu0 %671
        %673 = vrot.lane.b32.xlu0 %v404, 127
        %v674 = vpop.permute.xlu0 %673
        %vm675 = vcmask 1039360
        %v676 = vsel %vm675, %v668, %v670
        %v677 = vsel %vm675, %v672, %v674
        %vm680 = vcmask 1039360
        %v683 = vsel %vm680, %v670, %v668
        %v687 = vsel %vm680, %v674, %v672
        %v689 = vld [vmem:[%s1] sm:$0x44]
        %v691 = vunpack.c.l.b16 %v689
        %v692 = vunpack.c.h.b16 %v689
        %v693 = vpack.c.b16 %v691, %v691
        %v694 = vpack.c.b16 %v692, %v692
        %v696 = vshrl.u32 %v693, 16
        %v697 = vpack.i.b16 %v696, %v696
        %v699 = vperm.slane %v697, 2
        %v701 = vshrl.u32 %v694, 16
        %v702 = vpack.i.b16 %v701, %v701
        %v704 = vperm.slane %v702, 2
        %v705 = vunpack.c.l.bf16 %v676
        %v706 = vunpack.c.l.bf16 %v683
        %v707 = vunpack.c.h.bf16 %v676
        %v708 = vunpack.c.h.bf16 %v683
        %v709 = vunpack.c.l.bf16 %v677
        %v710 = vunpack.c.l.bf16 %v687
        %v711 = vunpack.c.h.bf16 %v677
        %v712 = vunpack.c.h.bf16 %v687
        %v713 = vunpack.c.l.bf16 %v699
        %v714 = vunpack.c.l.bf16 %v704
        %v715 = vmul.f32 %v705, %v713
        %v716 = vmul.f32 %v706, %v714
        %v717 = vmul.f32 %v707, %v713
        %v718 = vmul.f32 %v708, %v714
        %v719 = vmul.f32 %v709, %v713
        %v720 = vmul.f32 %v710, %v714
        %v721 = vmul.f32 %v711, %v713
        %v722 = vmul.f32 %v712, %v714
        %v723 = vpack.c.bf16 %v716, %v715
        %v724 = vpack.c.bf16 %v718, %v717
        %v725 = vpack.c.bf16 %v720, %v719
        %v726 = vpack.c.bf16 %v722, %v721
        %727 = vst [vmem:[#allocation2 + $0xa0] sm:$0xff] %v723
        %728 = vst [vmem:[#allocation2 + $0xa8] sm:$0xff] %v724
        %729 = vst [vmem:[#allocation2 + $0xb0] sm:$0xff] %v725
        %730 = vst [vmem:[#allocation2 + $0xb8] sm:$0xff] %v726
        %731 = vrot.lane.b32.xlu0 %v413, 113
        %v732 = vpop.permute.xlu0 %731
        %733 = vrot.lane.b32.xlu0 %v403, 113
        %v734 = vpop.permute.xlu0 %733
        %735 = vrot.lane.b32.xlu0 %v414, 113
        %v736 = vpop.permute.xlu0 %735
        %737 = vrot.lane.b32.xlu0 %v404, 113
        %v738 = vpop.permute.xlu0 %737
        %vm739 = vcmask 924672
        %v740 = vsel %vm739, %v732, %v734
        %v741 = vsel %vm739, %v736, %v738
        %vm744 = vcmask 924672
        %v747 = vsel %vm744, %v734, %v732
        %v751 = vsel %vm744, %v738, %v736
        %v753 = vld [vmem:[%s1] sm:$0x88]
        %v755 = vunpack.c.l.b16 %v753
        %v756 = vunpack.c.h.b16 %v753
        %v757 = vpack.c.b16 %v755, %v755
        %v758 = vpack.c.b16 %v756, %v756
        %v760 = vpack.i.b16 %v757, %v757
        %v762 = vperm.slane %v760, 3
        %v764 = vpack.i.b16 %v758, %v758
        %v766 = vperm.slane %v764, 3
        %v767 = vunpack.c.l.bf16 %v740
        %v768 = vunpack.c.l.bf16 %v747
        %v769 = vunpack.c.h.bf16 %v740
        %v770 = vunpack.c.h.bf16 %v747
        %v771 = vunpack.c.l.bf16 %v741
        %v772 = vunpack.c.l.bf16 %v751
        %v773 = vunpack.c.h.bf16 %v741
        %v774 = vunpack.c.h.bf16 %v751
        %v775 = vunpack.c.l.bf16 %v762
        %v776 = vunpack.c.l.bf16 %v766
        %v777 = vmul.f32 %v767, %v775
        %v778 = vmul.f32 %v768, %v776
        %v779 = vmul.f32 %v769, %v775
        %v780 = vmul.f32 %v770, %v776
        %v781 = vmul.f32 %v771, %v775
        %v782 = vmul.f32 %v772, %v776
        %v783 = vmul.f32 %v773, %v775
        %v784 = vmul.f32 %v774, %v776
        %v785 = vpack.c.bf16 %v778, %v777
        %v786 = vpack.c.bf16 %v780, %v779
        %v787 = vpack.c.bf16 %v782, %v781
        %v788 = vpack.c.bf16 %v784, %v783
        %789 = vst [vmem:[#allocation2 + $0xc0] sm:$0xff] %v785
        %790 = vst [vmem:[#allocation2 + $0xc8] sm:$0xff] %v786
        %791 = vst [vmem:[#allocation2 + $0xd0] sm:$0xff] %v787
        %792 = vst [vmem:[#allocation2 + $0xd8] sm:$0xff] %v788
        %793 = vrot.lane.b32.xlu0 %v413, 112
        %v794 = vpop.permute.xlu0 %793
        %795 = vrot.lane.b32.xlu0 %v403, 112
        %v796 = vpop.permute.xlu0 %795
        %797 = vrot.lane.b32.xlu0 %v414, 112
        %v798 = vpop.permute.xlu0 %797
        %799 = vrot.lane.b32.xlu0 %v404, 112
        %v800 = vpop.permute.xlu0 %799
        %vm801 = vcmask 916480
        %v802 = vsel %vm801, %v794, %v796
        %v803 = vsel %vm801, %v798, %v800
        %vm806 = vcmask 916480
        %v809 = vsel %vm806, %v796, %v794
        %v813 = vsel %vm806, %v800, %v798
        %v815 = vld [vmem:[%s1] sm:$0x88]
        %v817 = vunpack.c.l.b16 %v815
        %v818 = vunpack.c.h.b16 %v815
        %v819 = vpack.c.b16 %v817, %v817
        %v820 = vpack.c.b16 %v818, %v818
        %v822 = vshrl.u32 %v819, 16
        %v823 = vpack.i.b16 %v822, %v822
        %v825 = vperm.slane %v823, 3
        %v827 = vshrl.u32 %v820, 16
        %v828 = vpack.i.b16 %v827, %v827
        %v830 = vperm.slane %v828, 3
        %v831 = vunpack.c.l.bf16 %v802
        %v832 = vunpack.c.l.bf16 %v809
        %v833 = vunpack.c.h.bf16 %v802
        %v834 = vunpack.c.h.bf16 %v809
        %v835 = vunpack.c.l.bf16 %v803
        %v836 = vunpack.c.l.bf16 %v813
        %v837 = vunpack.c.h.bf16 %v803
        %v838 = vunpack.c.h.bf16 %v813
        %v839 = vunpack.c.l.bf16 %v825
        %v840 = vunpack.c.l.bf16 %v830
        %v841 = vmul.f32 %v831, %v839
        %v842 = vmul.f32 %v832, %v840
        %v843 = vmul.f32 %v833, %v839
        %v844 = vmul.f32 %v834, %v840
        %v845 = vmul.f32 %v835, %v839
        %v846 = vmul.f32 %v836, %v840
        %v847 = vmul.f32 %v837, %v839
        %v848 = vmul.f32 %v838, %v840
        %v849 = vpack.c.bf16 %v842, %v841
        %v850 = vpack.c.bf16 %v844, %v843
        %v851 = vpack.c.bf16 %v846, %v845
        %v852 = vpack.c.bf16 %v848, %v847
        %853 = vst [vmem:[#allocation2 + $0xe0] sm:$0xff] %v849
        %854 = vst [vmem:[#allocation2 + $0xe8] sm:$0xff] %v850
        %855 = vst [vmem:[#allocation2 + $0xf0] sm:$0xff] %v851
        %856 = vst [vmem:[#allocation2 + $0xf8] sm:$0xff] %v852
        %857 = vrot.lane.b32.xlu0 %v413, 111
        %v858 = vpop.permute.xlu0 %857
        %859 = vrot.lane.b32.xlu0 %v403, 111
        %v860 = vpop.permute.xlu0 %859
        %861 = vrot.lane.b32.xlu0 %v414, 111
        %v862 = vpop.permute.xlu0 %861
        %863 = vrot.lane.b32.xlu0 %v404, 111
        %v864 = vpop.permute.xlu0 %863
        %vm865 = vcmask 908288
        %v866 = vsel %vm865, %v858, %v860
        %v867 = vsel %vm865, %v862, %v864
        %vm870 = vcmask 908288
        %v873 = vsel %vm870, %v860, %v858
        %v877 = vsel %vm870, %v864, %v862
        %v879 = vld [vmem:[%s1 + $0x8] sm:$0x11]
        %v881 = vunpack.c.l.b16 %v879
        %v882 = vunpack.c.h.b16 %v879
        %v883 = vpack.c.b16 %v881, %v881
        %v884 = vpack.c.b16 %v882, %v882
        %v886 = vpack.i.b16 %v883, %v883
        %v888 = vperm.slane %v886, 0
        %v890 = vpack.i.b16 %v884, %v884
        %v892 = vperm.slane %v890, 0
        %v893 = vunpack.c.l.bf16 %v866
        %v894 = vunpack.c.l.bf16 %v873
        %v895 = vunpack.c.h.bf16 %v866
        %v896 = vunpack.c.h.bf16 %v873
        %v897 = vunpack.c.l.bf16 %v867
        %v898 = vunpack.c.l.bf16 %v877
        %v899 = vunpack.c.h.bf16 %v867
        %v900 = vunpack.c.h.bf16 %v877
        %v901 = vunpack.c.l.bf16 %v888
        %v902 = vunpack.c.l.bf16 %v892
        %v903 = vmul.f32 %v893, %v901
        %v904 = vmul.f32 %v894, %v902
        %v905 = vmul.f32 %v895, %v901
        %v906 = vmul.f32 %v896, %v902
        %v907 = vmul.f32 %v897, %v901
        %v908 = vmul.f32 %v898, %v902
        %v909 = vmul.f32 %v899, %v901
        %v910 = vmul.f32 %v900, %v902
        %v911 = vpack.c.bf16 %v904, %v903
        %v912 = vpack.c.bf16 %v906, %v905
        %v913 = vpack.c.bf16 %v908, %v907
        %v914 = vpack.c.bf16 %v910, %v909
        %915 = vst [vmem:[#allocation2 + $0x100] sm:$0xff] %v911
        %916 = vst [vmem:[#allocation2 + $0x108] sm:$0xff] %v912
        %917 = vst [vmem:[#allocation2 + $0x110] sm:$0xff] %v913
        %918 = vst [vmem:[#allocation2 + $0x118] sm:$0xff] %v914
        %v919 = vld [vmem:[%s2] sm:$0xff]
        %v920 = vld [vmem:[%s2 + $0x8] sm:$0xf]
        %v921 = vld [vmem:[%s2 + $0xc] sm:$0xff]
        %v922 = vld [vmem:[%s2 + $0x14] sm:$0xf]
        %v923 = vld [vmem:[%s2 + $0x18] sm:$0xff]
        %v924 = vld [vmem:[%s2 + $0x20] sm:$0xf]
        %v925 = vld [vmem:[%s2 + $0x24] sm:$0xff]
        %v926 = vld [vmem:[%s2 + $0x2c] sm:$0xf]
        %v927 = vld [vmem:[#allocation2] sm:$0xff]
        %v928 = vld [vmem:[#allocation2 + $0x8] sm:$0xff]
        %v929 = vld [vmem:[#allocation2 + $0x10] sm:$0xff]
        %v930 = vld [vmem:[#allocation2 + $0x18] sm:$0xff]
        %v931 = vld [vmem:[#allocation2 + $0x20] sm:$0xff]
        %v932 = vld [vmem:[#allocation2 + $0x28] sm:$0xff]
        %v933 = vld [vmem:[#allocation2 + $0x30] sm:$0xff]
        %v934 = vld [vmem:[#allocation2 + $0x38] sm:$0xff]
        %v935 = vld [vmem:[#allocation2 + $0x40] sm:$0xff]
        %v936 = vld [vmem:[#allocation2 + $0x48] sm:$0xff]
        %v937 = vld [vmem:[#allocation2 + $0x50] sm:$0xff]
        %v938 = vld [vmem:[#allocation2 + $0x58] sm:$0xff]
        %v939 = vld [vmem:[#allocation2 + $0x60] sm:$0xff]
        %v940 = vld [vmem:[#allocation2 + $0x68] sm:$0xff]
        %v941 = vld [vmem:[#allocation2 + $0x70] sm:$0xff]
        %v942 = vld [vmem:[#allocation2 + $0x78] sm:$0xff]
        %v943 = vld [vmem:[#allocation2 + $0x80] sm:$0xff]
        %v944 = vld [vmem:[#allocation2 + $0x88] sm:$0xff]
        %v945 = vld [vmem:[#allocation2 + $0x90] sm:$0xff]
        %v946 = vld [vmem:[#allocation2 + $0x98] sm:$0xff]
        %v947 = vld [vmem:[#allocation2 + $0xa0] sm:$0xff]
        %v948 = vld [vmem:[#allocation2 + $0xa8] sm:$0xff]
        %v949 = vld [vmem:[#allocation2 + $0xb0] sm:$0xff]
        %v950 = vld [vmem:[#allocation2 + $0xb8] sm:$0xff]
        %v951 = vld [vmem:[#allocation2 + $0xc0] sm:$0xff]
        %v952 = vld [vmem:[#allocation2 + $0xc8] sm:$0xff]
        %v953 = vld [vmem:[#allocation2 + $0xd0] sm:$0xff]
        %v954 = vld [vmem:[#allocation2 + $0xd8] sm:$0xff]
        %v955 = vld [vmem:[#allocation2 + $0xe0] sm:$0xff]
        %v956 = vld [vmem:[#allocation2 + $0xe8] sm:$0xff]
        %v957 = vld [vmem:[#allocation2 + $0xf0] sm:$0xff]
        %v958 = vld [vmem:[#allocation2 + $0xf8] sm:$0xff]
        %v959 = vld [vmem:[#allocation2 + $0x100] sm:$0xff]
        %v960 = vld [vmem:[#allocation2 + $0x108] sm:$0xff]
        %v961 = vld [vmem:[#allocation2 + $0x110] sm:$0xff]
        %v962 = vld [vmem:[#allocation2 + $0x118] sm:$0xff]
        %v971 = vunpack.c.l.b16 %v919
        %v972 = vunpack.c.h.b16 %v919
        %v973 = vunpack.c.l.b16 %v920
        %v974 = vunpack.c.l.b16 %v921
        %v975 = vunpack.c.h.b16 %v921
        %v976 = vunpack.c.l.b16 %v922
        %v977 = vunpack.c.l.b16 %v923
        %v978 = vunpack.c.h.b16 %v923
        %v979 = vunpack.c.l.b16 %v924
        %v980 = vunpack.c.l.b16 %v925
        %v981 = vunpack.c.h.b16 %v925
        %v982 = vunpack.c.l.b16 %v926
        %v983 = vpack.c.b16 %v974, %v971
        %v984 = vpack.c.b16 %v975, %v972
        %v985 = vpack.c.b16 %v976, %v973
        %v986 = vpack.c.b16 %v980, %v977
        %v987 = vpack.c.b16 %v981, %v978
        %v988 = vpack.c.b16 %v982, %v979
        %v1029 = vunpack.c.l.b16 %v927
        %v1030 = vunpack.c.h.b16 %v927
        %v1031 = vunpack.c.l.b16 %v928
        %v1032 = vunpack.c.h.b16 %v928
        %v1033 = vunpack.c.l.b16 %v929
        %v1034 = vunpack.c.h.b16 %v929
        %v1035 = vunpack.c.l.b16 %v930
        %v1036 = vunpack.c.h.b16 %v930
        %v1037 = vunpack.c.l.b16 %v931
        %v1038 = vunpack.c.h.b16 %v931
        %v1039 = vunpack.c.l.b16 %v932
        %v1040 = vunpack.c.h.b16 %v932
        %v1041 = vunpack.c.l.b16 %v933
        %v1042 = vunpack.c.h.b16 %v933
        %v1043 = vunpack.c.l.b16 %v934
        %v1044 = vunpack.c.h.b16 %v934
        %v1045 = vunpack.c.l.b16 %v935
        %v1046 = vunpack.c.h.b16 %v935
        %v1047 = vunpack.c.l.b16 %v936
        %v1048 = vunpack.c.h.b16 %v936
        %v1049 = vunpack.c.l.b16 %v937
        %v1050 = vunpack.c.h.b16 %v937
        %v1051 = vunpack.c.l.b16 %v938
        %v1052 = vunpack.c.h.b16 %v938
        %v1053 = vunpack.c.l.b16 %v939
        %v1054 = vunpack.c.h.b16 %v939
        %v1055 = vunpack.c.l.b16 %v940
        %v1056 = vunpack.c.h.b16 %v940
        %v1057 = vunpack.c.l.b16 %v941
        %v1058 = vunpack.c.h.b16 %v941
        %v1059 = vunpack.c.l.b16 %v942
        %v1060 = vunpack.c.h.b16 %v942
        %v1061 = vunpack.c.l.b16 %v943
        %v1062 = vunpack.c.h.b16 %v943
        %v1063 = vunpack.c.l.b16 %v944
        %v1064 = vunpack.c.h.b16 %v944
        %v1065 = vunpack.c.l.b16 %v945
        %v1066 = vunpack.c.h.b16 %v945
        %v1067 = vunpack.c.l.b16 %v946
        %v1068 = vunpack.c.h.b16 %v946
        %v1069 = vunpack.c.l.b16 %v947
        %v1070 = vunpack.c.h.b16 %v947
        %v1071 = vunpack.c.l.b16 %v948
        %v1072 = vunpack.c.h.b16 %v948
        %v1073 = vunpack.c.l.b16 %v949
        %v1074 = vunpack.c.h.b16 %v949
        %v1075 = vunpack.c.l.b16 %v950
        %v1076 = vunpack.c.h.b16 %v950
        %v1077 = vunpack.c.l.b16 %v951
        %v1078 = vunpack.c.h.b16 %v951
        %v1079 = vunpack.c.l.b16 %v952
        %v1080 = vunpack.c.h.b16 %v952
        %v1081 = vunpack.c.l.b16 %v953
        %v1082 = vunpack.c.h.b16 %v953
        %v1083 = vunpack.c.l.b16 %v954
        %v1084 = vunpack.c.h.b16 %v954
        %v1085 = vunpack.c.l.b16 %v955
        %v1086 = vunpack.c.h.b16 %v955
        %v1087 = vunpack.c.l.b16 %v956
        %v1088 = vunpack.c.h.b16 %v956
        %v1089 = vunpack.c.l.b16 %v957
        %v1090 = vunpack.c.h.b16 %v957
        %v1091 = vunpack.c.l.b16 %v958
        %v1092 = vunpack.c.h.b16 %v958
        %v1093 = vunpack.c.l.b16 %v959
        %v1094 = vunpack.c.h.b16 %v959
        %v1095 = vunpack.c.l.b16 %v960
        %v1096 = vunpack.c.h.b16 %v960
        %v1097 = vunpack.c.l.b16 %v961
        %v1098 = vunpack.c.h.b16 %v961
        %v1099 = vunpack.c.l.b16 %v962
        %v1100 = vunpack.c.h.b16 %v962
        %v1101 = vpack.c.b16 %v1031, %v1029
        %v1102 = vpack.c.b16 %v1032, %v1030
        %v1103 = vpack.c.b16 %v1035, %v1033
        %v1104 = vpack.c.b16 %v1036, %v1034
        %v1105 = vpack.c.b16 %v1039, %v1037
        %v1106 = vpack.c.b16 %v1040, %v1038
        %v1107 = vpack.c.b16 %v1043, %v1041
        %v1108 = vpack.c.b16 %v1044, %v1042
        %v1109 = vpack.c.b16 %v1047, %v1045
        %v1110 = vpack.c.b16 %v1048, %v1046
        %v1111 = vpack.c.b16 %v1051, %v1049
        %v1112 = vpack.c.b16 %v1052, %v1050
        %v1113 = vpack.c.b16 %v1055, %v1053
        %v1114 = vpack.c.b16 %v1056, %v1054
        %v1115 = vpack.c.b16 %v1059, %v1057
        %v1116 = vpack.c.b16 %v1060, %v1058
        %v1117 = vpack.c.b16 %v1063, %v1061
        %v1118 = vpack.c.b16 %v1064, %v1062
        %v1119 = vpack.c.b16 %v1067, %v1065
        %v1120 = vpack.c.b16 %v1068, %v1066
        %v1121 = vpack.c.b16 %v1071, %v1069
        %v1122 = vpack.c.b16 %v1072, %v1070
        %v1123 = vpack.c.b16 %v1075, %v1073
        %v1124 = vpack.c.b16 %v1076, %v1074
        %v1125 = vpack.c.b16 %v1079, %v1077
        %v1126 = vpack.c.b16 %v1080, %v1078
        %v1127 = vpack.c.b16 %v1083, %v1081
        %v1128 = vpack.c.b16 %v1084, %v1082
        %v1129 = vpack.c.b16 %v1087, %v1085
        %v1130 = vpack.c.b16 %v1088, %v1086
        %v1131 = vpack.c.b16 %v1091, %v1089
        %v1132 = vpack.c.b16 %v1092, %v1090
        %v1133 = vpack.c.b16 %v1095, %v1093
        %v1134 = vpack.c.b16 %v1096, %v1094
        %v1135 = vpack.c.b16 %v1099, %v1097
        %v1136 = vpack.c.b16 %v1100, %v1098
        %vm1173 = vcmask 261120
        %v1175 = vsel %vm1173, %v985, 0
        %v1178 = vsel %vm1173, %v988, 0
        %1180 = vmatpush.bf16.msra.mxu0 %v1115
        %1181 = vmatpush.bf16.msra.mxu0 %v1113
        %1182 = vmatpush.bf16.msra.mxu0 %v1111
        %1183 = vmatpush.bf16.msra.mxu0 %v1109
        %1184 = vmatpush.bf16.msra.mxu0 %v1107
        %1185 = vmatpush.bf16.msra.mxu0 %v1105
        %1186 = vmatpush.bf16.msra.mxu0 %v1103
        %1187 = vmatpush.bf16.msra.mxu0 %v1101
        %1188 = vmatmul.bf16.gmra.mxu0 %v983
        %v1189 = vpop.f32.mrf.mxu0
        %v1190 = vadd.f32 0.0, %v1189
        %v1191 = vpop.f32.mrf.mxu0
        %v1192 = vadd.f32 0.0, %v1191
        %1193 = vmatmul.bf16.gmra.mxu0 %v986
        %v1194 = vpop.f32.mrf.mxu0
        %v1195 = vadd.f32 0.0, %v1194
        %v1196 = vpop.f32.mrf.mxu0
        %v1197 = vadd.f32 0.0, %v1196
        %1198 = vdwg.mxu0
        %1199 = vmatpush.bf16.msra.mxu0 %v1131
        %1200 = vmatpush.bf16.msra.mxu0 %v1129
        %1201 = vmatpush.bf16.msra.mxu0 %v1127
        %1202 = vmatpush.bf16.msra.mxu0 %v1125
        %1203 = vmatpush.bf16.msra.mxu0 %v1123
        %1204 = vmatpush.bf16.msra.mxu0 %v1121
        %1205 = vmatpush.bf16.msra.mxu0 %v1119
        %1206 = vmatpush.bf16.msra.mxu0 %v1117
        %1207 = vmatmul.bf16.gmra.mxu0 %v984
        %v1208 = vpop.f32.mrf.mxu0
        %v1209 = vadd.f32 %v1190, %v1208
        %v1210 = vpop.f32.mrf.mxu0
        %v1211 = vadd.f32 %v1192, %v1210
        %1212 = vmatmul.bf16.gmra.mxu0 %v987
        %v1213 = vpop.f32.mrf.mxu0
        %v1214 = vadd.f32 %v1195, %v1213
        %v1215 = vpop.f32.mrf.mxu0
        %v1216 = vadd.f32 %v1197, %v1215
        %1217 = vdwg.mxu0
        %1218 = vmatpush.bf16.msra.mxu0 0
        %1219 = vmatpush.bf16.msra.mxu0 0
        %1220 = vmatpush.bf16.msra.mxu0 0
        %1221 = vmatpush.bf16.msra.mxu0 0
        %1222 = vmatpush.bf16.msra.mxu0 0
        %1223 = vmatpush.bf16.msra.mxu0 0
        %1224 = vmatpush.bf16.msra.mxu0 %v1135
        %1225 = vmatpush.bf16.msra.mxu0 %v1133
        %1226 = vmatmul.bf16.gmra.mxu0 %v1175
        %v1227 = vpop.f32.mrf.mxu0
        %v1228 = vadd.f32 %v1209, %v1227
        %v1229 = vpop.f32.mrf.mxu0
        %v1230 = vadd.f32 %v1211, %v1229
        %1231 = vmatmul.bf16.gmra.mxu0 %v1178
        %v1232 = vpop.f32.mrf.mxu0
        %v1233 = vadd.f32 %v1214, %v1232
        %v1234 = vpop.f32.mrf.mxu0
        %v1235 = vadd.f32 %v1216, %v1234
        %1236 = vdwg.mxu0
        %1237 = vmatpush.bf16.msra.mxu0 %v1116
        %1238 = vmatpush.bf16.msra.mxu0 %v1114
        %1239 = vmatpush.bf16.msra.mxu0 %v1112
        %1240 = vmatpush.bf16.msra.mxu0 %v1110
        %1241 = vmatpush.bf16.msra.mxu0 %v1108
        %1242 = vmatpush.bf16.msra.mxu0 %v1106
        %1243 = vmatpush.bf16.msra.mxu0 %v1104
        %1244 = vmatpush.bf16.msra.mxu0 %v1102
        %1245 = vmatmul.bf16.gmra.mxu0 %v983
        %v1246 = vpop.f32.mrf.mxu0
        %v1247 = vadd.f32 0.0, %v1246
        %v1248 = vpop.f32.mrf.mxu0
        %v1249 = vadd.f32 0.0, %v1248
        %1250 = vmatmul.bf16.gmra.mxu0 %v986
        %v1251 = vpop.f32.mrf.mxu0
        %v1252 = vadd.f32 0.0, %v1251
        %v1253 = vpop.f32.mrf.mxu0
        %v1254 = vadd.f32 0.0, %v1253
        %1255 = vdwg.mxu0
        %1256 = vmatpush.bf16.msra.mxu0 %v1132
        %1257 = vmatpush.bf16.msra.mxu0 %v1130
        %1258 = vmatpush.bf16.msra.mxu0 %v1128
        %1259 = vmatpush.bf16.msra.mxu0 %v1126
        %1260 = vmatpush.bf16.msra.mxu0 %v1124
        %1261 = vmatpush.bf16.msra.mxu0 %v1122
        %1262 = vmatpush.bf16.msra.mxu0 %v1120
        %1263 = vmatpush.bf16.msra.mxu0 %v1118
        %1264 = vmatmul.bf16.gmra.mxu0 %v984
        %v1265 = vpop.f32.mrf.mxu0
        %v1266 = vadd.f32 %v1247, %v1265
        %v1267 = vpop.f32.mrf.mxu0
        %v1268 = vadd.f32 %v1249, %v1267
        %1269 = vmatmul.bf16.gmra.mxu0 %v987
        %v1270 = vpop.f32.mrf.mxu0
        %v1271 = vadd.f32 %v1252, %v1270
        %v1272 = vpop.f32.mrf.mxu0
        %v1273 = vadd.f32 %v1254, %v1272
        %1274 = vdwg.mxu0
        %1275 = vmatpush.bf16.msra.mxu0 0
        %1276 = vmatpush.bf16.msra.mxu0 0
        %1277 = vmatpush.bf16.msra.mxu0 0
        %1278 = vmatpush.bf16.msra.mxu0 0
        %1279 = vmatpush.bf16.msra.mxu0 0
        %1280 = vmatpush.bf16.msra.mxu0 0
        %1281 = vmatpush.bf16.msra.mxu0 %v1136
        %1282 = vmatpush.bf16.msra.mxu0 %v1134
        %1283 = vmatmul.bf16.gmra.mxu0 %v1175
        %v1284 = vpop.f32.mrf.mxu0
        %v1285 = vadd.f32 %v1266, %v1284
        %v1286 = vpop.f32.mrf.mxu0
        %v1287 = vadd.f32 %v1268, %v1286
        %1288 = vmatmul.bf16.gmra.mxu0 %v1178
        %v1289 = vpop.f32.mrf.mxu0
        %v1290 = vadd.f32 %v1271, %v1289
        %v1291 = vpop.f32.mrf.mxu0
        %v1292 = vadd.f32 %v1273, %v1291
        %1293 = vdwg.mxu0
        %v1294 = vld [vmem:[%s3] sm:$0xff]
        %v1295 = vld [vmem:[%s3 + $0x8] sm:$0xff]
        %v1296 = vld [vmem:[%s3 + $0x10] sm:$0xff]
        %v1297 = vld [vmem:[%s3 + $0x18] sm:$0xff]
        %1299 = vset.pattern.permute.xlu0 0
        %1300 = vperm.xlu0 %1299, %v1294
        %v1301 = vpop.permute.xlu0 %1300
        %1304 = vset.pattern.permute.xlu0 0
        %1305 = vperm.xlu0 %1304, %v1295
        %v1306 = vpop.permute.xlu0 %1305
        %1309 = vset.pattern.permute.xlu0 0
        %1310 = vperm.xlu0 %1309, %v1296
        %v1311 = vpop.permute.xlu0 %1310
        %1314 = vset.pattern.permute.xlu0 0
        %1315 = vperm.xlu0 %1314, %v1297
        %v1316 = vpop.permute.xlu0 %1315
        %v1318 = vmul.f32 %v1228, %v1301
        %v1319 = vmul.f32 %v1285, %v1301
        %v1320 = vmul.f32 %v1230, %v1306
        %v1321 = vmul.f32 %v1287, %v1306
        %v1322 = vmul.f32 %v1233, %v1311
        %v1323 = vmul.f32 %v1290, %v1311
        %v1324 = vmul.f32 %v1235, %v1316
        %v1325 = vmul.f32 %v1292, %v1316
        %v1326 = vld [vmem:[%s4] sm:$0xff]
        %v1327 = vld [vmem:[%s4 + $0x8] sm:$0xff]
        %v1328 = vld [vmem:[%s4 + $0x10] sm:$0xff]
        %v1329 = vld [vmem:[%s4 + $0x18] sm:$0xff]
        %1331 = vset.pattern.permute.xlu0 0
        %1332 = vperm.xlu0 %1331, %v1326
        %v1333 = vpop.permute.xlu0 %1332
        %1336 = vset.pattern.permute.xlu0 0
        %1337 = vperm.xlu0 %1336, %v1327
        %v1338 = vpop.permute.xlu0 %1337
        %1341 = vset.pattern.permute.xlu0 0
        %1342 = vperm.xlu0 %1341, %v1328
        %v1343 = vpop.permute.xlu0 %1342
        %1346 = vset.pattern.permute.xlu0 0
        %1347 = vperm.xlu0 %1346, %v1329
        %v1348 = vpop.permute.xlu0 %1347
        %v1350 = vadd.f32 %v1318, %v1333
        %v1351 = vadd.f32 %v1319, %v1333
        %v1352 = vadd.f32 %v1320, %v1338
        %v1353 = vadd.f32 %v1321, %v1338
        %v1354 = vadd.f32 %v1322, %v1343
        %v1355 = vadd.f32 %v1323, %v1343
        %v1356 = vadd.f32 %v1324, %v1348
        %v1357 = vadd.f32 %v1325, %v1348
        %v1358 = vmax.f32 %v1350, 0.0
        %v1359 = vmax.f32 %v1351, 0.0
        %v1360 = vmax.f32 %v1352, 0.0
        %v1361 = vmax.f32 %v1353, 0.0
        %v1362 = vmax.f32 %v1354, 0.0
        %v1363 = vmax.f32 %v1355, 0.0
        %v1364 = vmax.f32 %v1356, 0.0
        %v1365 = vmax.f32 %v1357, 0.0
        %v1366 = vpack.c.bf16 %v1359, %v1358
        %v1367 = vpack.c.bf16 %v1361, %v1360
        %v1368 = vpack.c.bf16 %v1363, %v1362
        %v1369 = vpack.c.bf16 %v1365, %v1364
        %v1374 = vunpack.c.h.b16 %v1366
        %v1375 = vunpack.c.h.b16 %v1367
        %v1376 = vunpack.c.h.b16 %v1368
        %v1377 = vunpack.c.h.b16 %v1369
        %v1378 = vpack.c.b16 %v1375, %v1374
        %v1379 = vpack.c.b16 %v1377, %v1376
        %1380 = vrot.lane.b32.xlu0 %v1378, 17
        %v1381 = vpop.permute.xlu0 %1380
        %1382 = vrot.lane.b32.xlu0 %v1379, 17
        %v1383 = vpop.permute.xlu0 %1382
        %v1384 = vunpack.c.l.b16 %v1366
        %v1385 = vunpack.c.l.b16 %v1367
        %v1386 = vunpack.c.l.b16 %v1368
        %v1387 = vunpack.c.l.b16 %v1369
        %v1388 = vpack.c.b16 %v1385, %v1384
        %v1389 = vpack.c.b16 %v1387, %v1386
        %1390 = vrot.lane.b32.xlu0 %v1388, 17
        %v1391 = vpop.permute.xlu0 %1390
        %1392 = vrot.lane.b32.xlu0 %v1389, 17
        %v1393 = vpop.permute.xlu0 %1392
        %v1394 = vsel %vm419, %v1391, %v1381
        %v1395 = vsel %vm419, %v1393, %v1383
        %v1400 = vsel %vm424, %v1381, %v1391
        %v1404 = vsel %vm424, %v1383, %v1393
        %v1406 = vld [vmem:[%s1] sm:$0x11]
        %v1408 = vunpack.c.l.b16 %v1406
        %v1409 = vunpack.c.h.b16 %v1406
        %v1410 = vpack.c.b16 %v1408, %v1408
        %v1411 = vpack.c.b16 %v1409, %v1409
        %v1413 = vpack.i.b16 %v1410, %v1410
        %v1415 = vperm.slane %v1413, 0
        %v1417 = vpack.i.b16 %v1411, %v1411
        %v1419 = vperm.slane %v1417, 0
        %v1420 = vunpack.c.l.bf16 %v1400
        %v1421 = vunpack.c.l.bf16 %v1394
        %v1422 = vunpack.c.h.bf16 %v1400
        %v1423 = vunpack.c.h.bf16 %v1394
        %v1424 = vunpack.c.l.bf16 %v1404
        %v1425 = vunpack.c.l.bf16 %v1395
        %v1426 = vunpack.c.h.bf16 %v1404
        %v1427 = vunpack.c.h.bf16 %v1395
        %v1428 = vunpack.c.l.bf16 %v1415
        %v1429 = vunpack.c.l.bf16 %v1419
        %v1430 = vmul.f32 %v1420, %v1428
        %v1431 = vmul.f32 %v1421, %v1429
        %v1432 = vmul.f32 %v1422, %v1428
        %v1433 = vmul.f32 %v1423, %v1429
        %v1434 = vmul.f32 %v1424, %v1428
        %v1435 = vmul.f32 %v1425, %v1429
        %v1436 = vmul.f32 %v1426, %v1428
        %v1437 = vmul.f32 %v1427, %v1429
        %v1438 = vpack.c.bf16 %v1431, %v1430
        %v1439 = vpack.c.bf16 %v1433, %v1432
        %v1440 = vpack.c.bf16 %v1435, %v1434
        %v1441 = vpack.c.bf16 %v1437, %v1436
        %1442 = vst [vmem:[#allocation2] sm:$0xff] %v1438
        %1443 = vst [vmem:[#allocation2 + $0x8] sm:$0xff] %v1439
        %1444 = vst [vmem:[#allocation2 + $0x10] sm:$0xff] %v1440
        %1445 = vst [vmem:[#allocation2 + $0x18] sm:$0xff] %v1441
        %1446 = vrot.lane.b32.xlu0 %v1378, 16
        %v1447 = vpop.permute.xlu0 %1446
        %1448 = vrot.lane.b32.xlu0 %v1379, 16
        %v1449 = vpop.permute.xlu0 %1448
        %1450 = vrot.lane.b32.xlu0 %v1388, 16
        %v1451 = vpop.permute.xlu0 %1450
        %1452 = vrot.lane.b32.xlu0 %v1389, 16
        %v1453 = vpop.permute.xlu0 %1452
        %v1454 = vsel %vm481, %v1451, %v1447
        %v1455 = vsel %vm481, %v1453, %v1449
        %v1460 = vsel %vm486, %v1447, %v1451
        %v1464 = vsel %vm486, %v1449, %v1453
        %v1466 = vld [vmem:[%s1] sm:$0x11]
        %v1468 = vunpack.c.l.b16 %v1466
        %v1469 = vunpack.c.h.b16 %v1466
        %v1470 = vpack.c.b16 %v1468, %v1468
        %v1471 = vpack.c.b16 %v1469, %v1469
        %v1473 = vshrl.u32 %v1470, 16
        %v1474 = vpack.i.b16 %v1473, %v1473
        %v1476 = vperm.slane %v1474, 0
        %v1478 = vshrl.u32 %v1471, 16
        %v1479 = vpack.i.b16 %v1478, %v1478
        %v1481 = vperm.slane %v1479, 0
        %v1482 = vunpack.c.l.bf16 %v1460
        %v1483 = vunpack.c.l.bf16 %v1454
        %v1484 = vunpack.c.h.bf16 %v1460
        %v1485 = vunpack.c.h.bf16 %v1454
        %v1486 = vunpack.c.l.bf16 %v1464
        %v1487 = vunpack.c.l.bf16 %v1455
        %v1488 = vunpack.c.h.bf16 %v1464
        %v1489 = vunpack.c.h.bf16 %v1455
        %v1490 = vunpack.c.l.bf16 %v1476
        %v1491 = vunpack.c.l.bf16 %v1481
        %v1492 = vmul.f32 %v1482, %v1490
        %v1493 = vmul.f32 %v1483, %v1491
        %v1494 = vmul.f32 %v1484, %v1490
        %v1495 = vmul.f32 %v1485, %v1491
        %v1496 = vmul.f32 %v1486, %v1490
        %v1497 = vmul.f32 %v1487, %v1491
        %v1498 = vmul.f32 %v1488, %v1490
        %v1499 = vmul.f32 %v1489, %v1491
        %v1500 = vpack.c.bf16 %v1493, %v1492
        %v1501 = vpack.c.bf16 %v1495, %v1494
        %v1502 = vpack.c.bf16 %v1497, %v1496
        %v1503 = vpack.c.bf16 %v1499, %v1498
        %1504 = vst [vmem:[#allocation2 + $0x20] sm:$0xff] %v1500
        %1505 = vst [vmem:[#allocation2 + $0x28] sm:$0xff] %v1501
        %1506 = vst [vmem:[#allocation2 + $0x30] sm:$0xff] %v1502
        %1507 = vst [vmem:[#allocation2 + $0x38] sm:$0xff] %v1503
        %1508 = vrot.lane.b32.xlu0 %v1378, 15
        %v1509 = vpop.permute.xlu0 %1508
        %1510 = vrot.lane.b32.xlu0 %v1379, 15
        %v1511 = vpop.permute.xlu0 %1510
        %1512 = vrot.lane.b32.xlu0 %v1388, 15
        %v1513 = vpop.permute.xlu0 %1512
        %1514 = vrot.lane.b32.xlu0 %v1389, 15
        %v1515 = vpop.permute.xlu0 %1514
        %v1516 = vsel %vm545, %v1513, %v1509
        %v1517 = vsel %vm545, %v1515, %v1511
        %v1522 = vsel %vm550, %v1509, %v1513
        %v1526 = vsel %vm550, %v1511, %v1515
        %v1528 = vld [vmem:[%s1] sm:$0x22]
        %v1530 = vunpack.c.l.b16 %v1528
        %v1531 = vunpack.c.h.b16 %v1528
        %v1532 = vpack.c.b16 %v1530, %v1530
        %v1533 = vpack.c.b16 %v1531, %v1531
        %v1535 = vpack.i.b16 %v1532, %v1532
        %v1537 = vperm.slane %v1535, 1
        %v1539 = vpack.i.b16 %v1533, %v1533
        %v1541 = vperm.slane %v1539, 1
        %v1542 = vunpack.c.l.bf16 %v1522
        %v1543 = vunpack.c.l.bf16 %v1516
        %v1544 = vunpack.c.h.bf16 %v1522
        %v1545 = vunpack.c.h.bf16 %v1516
        %v1546 = vunpack.c.l.bf16 %v1526
        %v1547 = vunpack.c.l.bf16 %v1517
        %v1548 = vunpack.c.h.bf16 %v1526
        %v1549 = vunpack.c.h.bf16 %v1517
        %v1550 = vunpack.c.l.bf16 %v1537
        %v1551 = vunpack.c.l.bf16 %v1541
        %v1552 = vmul.f32 %v1542, %v1550
        %v1553 = vmul.f32 %v1543, %v1551
        %v1554 = vmul.f32 %v1544, %v1550
        %v1555 = vmul.f32 %v1545, %v1551
        %v1556 = vmul.f32 %v1546, %v1550
        %v1557 = vmul.f32 %v1547, %v1551
        %v1558 = vmul.f32 %v1548, %v1550
        %v1559 = vmul.f32 %v1549, %v1551
        %v1560 = vpack.c.bf16 %v1553, %v1552
        %v1561 = vpack.c.bf16 %v1555, %v1554
        %v1562 = vpack.c.bf16 %v1557, %v1556
        %v1563 = vpack.c.bf16 %v1559, %v1558
        %1564 = vst [vmem:[#allocation2 + $0x40] sm:$0xff] %v1560
        %1565 = vst [vmem:[#allocation2 + $0x48] sm:$0xff] %v1561
        %1566 = vst [vmem:[#allocation2 + $0x50] sm:$0xff] %v1562
        %1567 = vst [vmem:[#allocation2 + $0x58] sm:$0xff] %v1563
        %1568 = vrot.lane.b32.xlu0 %v1378, 1
        %v1569 = vpop.permute.xlu0 %1568
        %1570 = vrot.lane.b32.xlu0 %v1379, 1
        %v1571 = vpop.permute.xlu0 %1570
        %1572 = vrot.lane.b32.xlu0 %v1388, 1
        %v1573 = vpop.permute.xlu0 %1572
        %1574 = vrot.lane.b32.xlu0 %v1389, 1
        %v1575 = vpop.permute.xlu0 %1574
        %v1576 = vsel %vm607, %v1573, %v1569
        %v1577 = vsel %vm607, %v1575, %v1571
        %v1582 = vsel %vm612, %v1569, %v1573
        %v1586 = vsel %vm612, %v1571, %v1575
        %v1588 = vld [vmem:[%s1] sm:$0x22]
        %v1590 = vunpack.c.l.b16 %v1588
        %v1591 = vunpack.c.h.b16 %v1588
        %v1592 = vpack.c.b16 %v1590, %v1590
        %v1593 = vpack.c.b16 %v1591, %v1591
        %v1595 = vshrl.u32 %v1592, 16
        %v1596 = vpack.i.b16 %v1595, %v1595
        %v1598 = vperm.slane %v1596, 1
        %v1600 = vshrl.u32 %v1593, 16
        %v1601 = vpack.i.b16 %v1600, %v1600
        %v1603 = vperm.slane %v1601, 1
        %v1604 = vunpack.c.l.bf16 %v1582
        %v1605 = vunpack.c.l.bf16 %v1576
        %v1606 = vunpack.c.h.bf16 %v1582
        %v1607 = vunpack.c.h.bf16 %v1576
        %v1608 = vunpack.c.l.bf16 %v1586
        %v1609 = vunpack.c.l.bf16 %v1577
        %v1610 = vunpack.c.h.bf16 %v1586
        %v1611 = vunpack.c.h.bf16 %v1577
        %v1612 = vunpack.c.l.bf16 %v1598
        %v1613 = vunpack.c.l.bf16 %v1603
        %v1614 = vmul.f32 %v1604, %v1612
        %v1615 = vmul.f32 %v1605, %v1613
        %v1616 = vmul.f32 %v1606, %v1612
        %v1617 = vmul.f32 %v1607, %v1613
        %v1618 = vmul.f32 %v1608, %v1612
        %v1619 = vmul.f32 %v1609, %v1613
        %v1620 = vmul.f32 %v1610, %v1612
        %v1621 = vmul.f32 %v1611, %v1613
        %v1622 = vpack.c.bf16 %v1615, %v1614
        %v1623 = vpack.c.bf16 %v1617, %v1616
        %v1624 = vpack.c.bf16 %v1619, %v1618
        %v1625 = vpack.c.bf16 %v1621, %v1620
        %1626 = vst [vmem:[#allocation2 + $0x60] sm:$0xff] %v1622
        %1627 = vst [vmem:[#allocation2 + $0x68] sm:$0xff] %v1623
        %1628 = vst [vmem:[#allocation2 + $0x70] sm:$0xff] %v1624
        %1629 = vst [vmem:[#allocation2 + $0x78] sm:$0xff] %v1625
        %1630 = vst [vmem:[#allocation2 + $0x80] sm:$0xff] %v1366
        %1631 = vst [vmem:[#allocation2 + $0x88] sm:$0xff] %v1367
        %1632 = vst [vmem:[#allocation2 + $0x90] sm:$0xff] %v1368
        %1633 = vst [vmem:[#allocation2 + $0x98] sm:$0xff] %v1369
        %1634 = vrot.lane.b32.xlu0 %v1388, 127
        %v1635 = vpop.permute.xlu0 %1634
        %1636 = vrot.lane.b32.xlu0 %v1378, 127
        %v1637 = vpop.permute.xlu0 %1636
        %1638 = vrot.lane.b32.xlu0 %v1389, 127
        %v1639 = vpop.permute.xlu0 %1638
        %1640 = vrot.lane.b32.xlu0 %v1379, 127
        %v1641 = vpop.permute.xlu0 %1640
        %v1642 = vsel %vm675, %v1635, %v1637
        %v1643 = vsel %vm675, %v1639, %v1641
        %v1648 = vsel %vm680, %v1637, %v1635
        %v1652 = vsel %vm680, %v1641, %v1639
        %v1654 = vld [vmem:[%s1] sm:$0x44]
        %v1656 = vunpack.c.l.b16 %v1654
        %v1657 = vunpack.c.h.b16 %v1654
        %v1658 = vpack.c.b16 %v1656, %v1656
        %v1659 = vpack.c.b16 %v1657, %v1657
        %v1661 = vshrl.u32 %v1658, 16
        %v1662 = vpack.i.b16 %v1661, %v1661
        %v1664 = vperm.slane %v1662, 2
        %v1666 = vshrl.u32 %v1659, 16
        %v1667 = vpack.i.b16 %v1666, %v1666
        %v1669 = vperm.slane %v1667, 2
        %v1670 = vunpack.c.l.bf16 %v1642
        %v1671 = vunpack.c.l.bf16 %v1648
        %v1672 = vunpack.c.h.bf16 %v1642
        %v1673 = vunpack.c.h.bf16 %v1648
        %v1674 = vunpack.c.l.bf16 %v1643
        %v1675 = vunpack.c.l.bf16 %v1652
        %v1676 = vunpack.c.h.bf16 %v1643
        %v1677 = vunpack.c.h.bf16 %v1652
        %v1678 = vunpack.c.l.bf16 %v1664
        %v1679 = vunpack.c.l.bf16 %v1669
        %v1680 = vmul.f32 %v1670, %v1678
        %v1681 = vmul.f32 %v1671, %v1679
        %v1682 = vmul.f32 %v1672, %v1678
        %v1683 = vmul.f32 %v1673, %v1679
        %v1684 = vmul.f32 %v1674, %v1678
        %v1685 = vmul.f32 %v1675, %v1679
        %v1686 = vmul.f32 %v1676, %v1678
        %v1687 = vmul.f32 %v1677, %v1679
        %v1688 = vpack.c.bf16 %v1681, %v1680
        %v1689 = vpack.c.bf16 %v1683, %v1682
        %v1690 = vpack.c.bf16 %v1685, %v1684
        %v1691 = vpack.c.bf16 %v1687, %v1686
        %1692 = vst [vmem:[#allocation2 + $0xa0] sm:$0xff] %v1688
        %1693 = vst [vmem:[#allocation2 + $0xa8] sm:$0xff] %v1689
        %1694 = vst [vmem:[#allocation2 + $0xb0] sm:$0xff] %v1690
        %1695 = vst [vmem:[#allocation2 + $0xb8] sm:$0xff] %v1691
        %1696 = vrot.lane.b32.xlu0 %v1388, 113
        %v1697 = vpop.permute.xlu0 %1696
        %1698 = vrot.lane.b32.xlu0 %v1378, 113
        %v1699 = vpop.permute.xlu0 %1698
        %1700 = vrot.lane.b32.xlu0 %v1389, 113
        %v1701 = vpop.permute.xlu0 %1700
        %1702 = vrot.lane.b32.xlu0 %v1379, 113
        %v1703 = vpop.permute.xlu0 %1702
        %v1704 = vsel %vm739, %v1697, %v1699
        %v1705 = vsel %vm739, %v1701, %v1703
        %v1710 = vsel %vm744, %v1699, %v1697
        %v1714 = vsel %vm744, %v1703, %v1701
        %v1716 = vld [vmem:[%s1] sm:$0x88]
        %v1718 = vunpack.c.l.b16 %v1716
        %v1719 = vunpack.c.h.b16 %v1716
        %v1720 = vpack.c.b16 %v1718, %v1718
        %v1721 = vpack.c.b16 %v1719, %v1719
        %v1723 = vpack.i.b16 %v1720, %v1720
        %v1725 = vperm.slane %v1723, 3
        %v1727 = vpack.i.b16 %v1721, %v1721
        %v1729 = vperm.slane %v1727, 3
        %v1730 = vunpack.c.l.bf16 %v1704
        %v1731 = vunpack.c.l.bf16 %v1710
        %v1732 = vunpack.c.h.bf16 %v1704
        %v1733 = vunpack.c.h.bf16 %v1710
        %v1734 = vunpack.c.l.bf16 %v1705
        %v1735 = vunpack.c.l.bf16 %v1714
        %v1736 = vunpack.c.h.bf16 %v1705
        %v1737 = vunpack.c.h.bf16 %v1714
        %v1738 = vunpack.c.l.bf16 %v1725
        %v1739 = vunpack.c.l.bf16 %v1729
        %v1740 = vmul.f32 %v1730, %v1738
        %v1741 = vmul.f32 %v1731, %v1739
        %v1742 = vmul.f32 %v1732, %v1738
        %v1743 = vmul.f32 %v1733, %v1739
        %v1744 = vmul.f32 %v1734, %v1738
        %v1745 = vmul.f32 %v1735, %v1739
        %v1746 = vmul.f32 %v1736, %v1738
        %v1747 = vmul.f32 %v1737, %v1739
        %v1748 = vpack.c.bf16 %v1741, %v1740
        %v1749 = vpack.c.bf16 %v1743, %v1742
        %v1750 = vpack.c.bf16 %v1745, %v1744
        %v1751 = vpack.c.bf16 %v1747, %v1746
        %1752 = vst [vmem:[#allocation2 + $0xc0] sm:$0xff] %v1748
        %1753 = vst [vmem:[#allocation2 + $0xc8] sm:$0xff] %v1749
        %1754 = vst [vmem:[#allocation2 + $0xd0] sm:$0xff] %v1750
        %1755 = vst [vmem:[#allocation2 + $0xd8] sm:$0xff] %v1751
        %1756 = vrot.lane.b32.xlu0 %v1388, 112
        %v1757 = vpop.permute.xlu0 %1756
        %1758 = vrot.lane.b32.xlu0 %v1378, 112
        %v1759 = vpop.permute.xlu0 %1758
        %1760 = vrot.lane.b32.xlu0 %v1389, 112
        %v1761 = vpop.permute.xlu0 %1760
        %1762 = vrot.lane.b32.xlu0 %v1379, 112
        %v1763 = vpop.permute.xlu0 %1762
        %v1764 = vsel %vm801, %v1757, %v1759
        %v1765 = vsel %vm801, %v1761, %v1763
        %v1770 = vsel %vm806, %v1759, %v1757
        %v1774 = vsel %vm806, %v1763, %v1761
        %v1776 = vld [vmem:[%s1] sm:$0x88]
        %v1778 = vunpack.c.l.b16 %v1776
        %v1779 = vunpack.c.h.b16 %v1776
        %v1780 = vpack.c.b16 %v1778, %v1778
        %v1781 = vpack.c.b16 %v1779, %v1779
        %v1783 = vshrl.u32 %v1780, 16
        %v1784 = vpack.i.b16 %v1783, %v1783
        %v1786 = vperm.slane %v1784, 3
        %v1788 = vshrl.u32 %v1781, 16
        %v1789 = vpack.i.b16 %v1788, %v1788
        %v1791 = vperm.slane %v1789, 3
        %v1792 = vunpack.c.l.bf16 %v1764
        %v1793 = vunpack.c.l.bf16 %v1770
        %v1794 = vunpack.c.h.bf16 %v1764
        %v1795 = vunpack.c.h.bf16 %v1770
        %v1796 = vunpack.c.l.bf16 %v1765
        %v1797 = vunpack.c.l.bf16 %v1774
        %v1798 = vunpack.c.h.bf16 %v1765
        %v1799 = vunpack.c.h.bf16 %v1774
        %v1800 = vunpack.c.l.bf16 %v1786
        %v1801 = vunpack.c.l.bf16 %v1791
        %v1802 = vmul.f32 %v1792, %v1800
        %v1803 = vmul.f32 %v1793, %v1801
        %v1804 = vmul.f32 %v1794, %v1800
        %v1805 = vmul.f32 %v1795, %v1801
        %v1806 = vmul.f32 %v1796, %v1800
        %v1807 = vmul.f32 %v1797, %v1801
        %v1808 = vmul.f32 %v1798, %v1800
        %v1809 = vmul.f32 %v1799, %v1801
        %v1810 = vpack.c.bf16 %v1803, %v1802
        %v1811 = vpack.c.bf16 %v1805, %v1804
        %v1812 = vpack.c.bf16 %v1807, %v1806
        %v1813 = vpack.c.bf16 %v1809, %v1808
        %1814 = vst [vmem:[#allocation2 + $0xe0] sm:$0xff] %v1810
        %1815 = vst [vmem:[#allocation2 + $0xe8] sm:$0xff] %v1811
        %1816 = vst [vmem:[#allocation2 + $0xf0] sm:$0xff] %v1812
        %1817 = vst [vmem:[#allocation2 + $0xf8] sm:$0xff] %v1813
        %1818 = vrot.lane.b32.xlu0 %v1388, 111
        %v1819 = vpop.permute.xlu0 %1818
        %1820 = vrot.lane.b32.xlu0 %v1378, 111
        %v1821 = vpop.permute.xlu0 %1820
        %1822 = vrot.lane.b32.xlu0 %v1389, 111
        %v1823 = vpop.permute.xlu0 %1822
        %1824 = vrot.lane.b32.xlu0 %v1379, 111
        %v1825 = vpop.permute.xlu0 %1824
        %v1826 = vsel %vm865, %v1819, %v1821
        %v1827 = vsel %vm865, %v1823, %v1825
        %v1832 = vsel %vm870, %v1821, %v1819
        %v1836 = vsel %vm870, %v1825, %v1823
        %v1838 = vld [vmem:[%s1 + $0x8] sm:$0x11]
        %v1840 = vunpack.c.l.b16 %v1838
        %v1841 = vunpack.c.h.b16 %v1838
        %v1842 = vpack.c.b16 %v1840, %v1840
        %v1843 = vpack.c.b16 %v1841, %v1841
        %v1845 = vpack.i.b16 %v1842, %v1842
        %v1847 = vperm.slane %v1845, 0
        %v1849 = vpack.i.b16 %v1843, %v1843
        %v1851 = vperm.slane %v1849, 0
        %v1852 = vunpack.c.l.bf16 %v1826
        %v1853 = vunpack.c.l.bf16 %v1832
        %v1854 = vunpack.c.h.bf16 %v1826
        %v1855 = vunpack.c.h.bf16 %v1832
        %v1856 = vunpack.c.l.bf16 %v1827
        %v1857 = vunpack.c.l.bf16 %v1836
        %v1858 = vunpack.c.h.bf16 %v1827
        %v1859 = vunpack.c.h.bf16 %v1836
        %v1860 = vunpack.c.l.bf16 %v1847
        %v1861 = vunpack.c.l.bf16 %v1851
        %v1862 = vmul.f32 %v1852, %v1860
        %v1863 = vmul.f32 %v1853, %v1861
        %v1864 = vmul.f32 %v1854, %v1860
        %v1865 = vmul.f32 %v1855, %v1861
        %v1866 = vmul.f32 %v1856, %v1860
        %v1867 = vmul.f32 %v1857, %v1861
        %v1868 = vmul.f32 %v1858, %v1860
        %v1869 = vmul.f32 %v1859, %v1861
        %v1870 = vpack.c.bf16 %v1863, %v1862
        %v1871 = vpack.c.bf16 %v1865, %v1864
        %v1872 = vpack.c.bf16 %v1867, %v1866
        %v1873 = vpack.c.bf16 %v1869, %v1868
        %1874 = vst [vmem:[#allocation2 + $0x100] sm:$0xff] %v1870
        %1875 = vst [vmem:[#allocation2 + $0x108] sm:$0xff] %v1871
        %1876 = vst [vmem:[#allocation2 + $0x110] sm:$0xff] %v1872
        %1877 = vst [vmem:[#allocation2 + $0x118] sm:$0xff] %v1873
        %v1878 = vld [vmem:[%s5] sm:$0xff]
        %v1879 = vld [vmem:[%s5 + $0x8] sm:$0xf]
        %v1880 = vld [vmem:[%s5 + $0xc] sm:$0xff]
        %v1881 = vld [vmem:[%s5 + $0x14] sm:$0xf]
        %v1882 = vld [vmem:[%s5 + $0x18] sm:$0xff]
        %v1883 = vld [vmem:[%s5 + $0x20] sm:$0xf]
        %v1884 = vld [vmem:[%s5 + $0x24] sm:$0xff]
        %v1885 = vld [vmem:[%s5 + $0x2c] sm:$0xf]
        %v1886 = vld [vmem:[#allocation2] sm:$0xff]
        %v1887 = vld [vmem:[#allocation2 + $0x8] sm:$0xff]
        %v1888 = vld [vmem:[#allocation2 + $0x10] sm:$0xff]
        %v1889 = vld [vmem:[#allocation2 + $0x18] sm:$0xff]
        %v1890 = vld [vmem:[#allocation2 + $0x20] sm:$0xff]
        %v1891 = vld [vmem:[#allocation2 + $0x28] sm:$0xff]
        %v1892 = vld [vmem:[#allocation2 + $0x30] sm:$0xff]
        %v1893 = vld [vmem:[#allocation2 + $0x38] sm:$0xff]
        %v1894 = vld [vmem:[#allocation2 + $0x40] sm:$0xff]
        %v1895 = vld [vmem:[#allocation2 + $0x48] sm:$0xff]
        %v1896 = vld [vmem:[#allocation2 + $0x50] sm:$0xff]
        %v1897 = vld [vmem:[#allocation2 + $0x58] sm:$0xff]
        %v1898 = vld [vmem:[#allocation2 + $0x60] sm:$0xff]
        %v1899 = vld [vmem:[#allocation2 + $0x68] sm:$0xff]
        %v1900 = vld [vmem:[#allocation2 + $0x70] sm:$0xff]
        %v1901 = vld [vmem:[#allocation2 + $0x78] sm:$0xff]
        %v1902 = vld [vmem:[#allocation2 + $0x80] sm:$0xff]
        %v1903 = vld [vmem:[#allocation2 + $0x88] sm:$0xff]
        %v1904 = vld [vmem:[#allocation2 + $0x90] sm:$0xff]
        %v1905 = vld [vmem:[#allocation2 + $0x98] sm:$0xff]
        %v1906 = vld [vmem:[#allocation2 + $0xa0] sm:$0xff]
        %v1907 = vld [vmem:[#allocation2 + $0xa8] sm:$0xff]
        %v1908 = vld [vmem:[#allocation2 + $0xb0] sm:$0xff]
        %v1909 = vld [vmem:[#allocation2 + $0xb8] sm:$0xff]
        %v1910 = vld [vmem:[#allocation2 + $0xc0] sm:$0xff]
        %v1911 = vld [vmem:[#allocation2 + $0xc8] sm:$0xff]
        %v1912 = vld [vmem:[#allocation2 + $0xd0] sm:$0xff]
        %v1913 = vld [vmem:[#allocation2 + $0xd8] sm:$0xff]
        %v1914 = vld [vmem:[#allocation2 + $0xe0] sm:$0xff]
        %v1915 = vld [vmem:[#allocation2 + $0xe8] sm:$0xff]
        %v1916 = vld [vmem:[#allocation2 + $0xf0] sm:$0xff]
        %v1917 = vld [vmem:[#allocation2 + $0xf8] sm:$0xff]
        %v1918 = vld [vmem:[#allocation2 + $0x100] sm:$0xff]
        %v1919 = vld [vmem:[#allocation2 + $0x108] sm:$0xff]
        %v1920 = vld [vmem:[#allocation2 + $0x110] sm:$0xff]
        %v1921 = vld [vmem:[#allocation2 + $0x118] sm:$0xff]
        %v1930 = vunpack.c.l.b16 %v1878
        %v1931 = vunpack.c.h.b16 %v1878
        %v1932 = vunpack.c.l.b16 %v1879
        %v1933 = vunpack.c.l.b16 %v1880
        %v1934 = vunpack.c.h.b16 %v1880
        %v1935 = vunpack.c.l.b16 %v1881
        %v1936 = vunpack.c.l.b16 %v1882
        %v1937 = vunpack.c.h.b16 %v1882
        %v1938 = vunpack.c.l.b16 %v1883
        %v1939 = vunpack.c.l.b16 %v1884
        %v1940 = vunpack.c.h.b16 %v1884
        %v1941 = vunpack.c.l.b16 %v1885
        %v1942 = vpack.c.b16 %v1933, %v1930
        %v1943 = vpack.c.b16 %v1934, %v1931
        %v1944 = vpack.c.b16 %v1935, %v1932
        %v1945 = vpack.c.b16 %v1939, %v1936
        %v1946 = vpack.c.b16 %v1940, %v1937
        %v1947 = vpack.c.b16 %v1941, %v1938
        %v1988 = vunpack.c.l.b16 %v1886
        %v1989 = vunpack.c.h.b16 %v1886
        %v1990 = vunpack.c.l.b16 %v1887
        %v1991 = vunpack.c.h.b16 %v1887
        %v1992 = vunpack.c.l.b16 %v1888
        %v1993 = vunpack.c.h.b16 %v1888
        %v1994 = vunpack.c.l.b16 %v1889
        %v1995 = vunpack.c.h.b16 %v1889
        %v1996 = vunpack.c.l.b16 %v1890
        %v1997 = vunpack.c.h.b16 %v1890
        %v1998 = vunpack.c.l.b16 %v1891
        %v1999 = vunpack.c.h.b16 %v1891
        %v2000 = vunpack.c.l.b16 %v1892
        %v2001 = vunpack.c.h.b16 %v1892
        %v2002 = vunpack.c.l.b16 %v1893
        %v2003 = vunpack.c.h.b16 %v1893
        %v2004 = vunpack.c.l.b16 %v1894
        %v2005 = vunpack.c.h.b16 %v1894
        %v2006 = vunpack.c.l.b16 %v1895
        %v2007 = vunpack.c.h.b16 %v1895
        %v2008 = vunpack.c.l.b16 %v1896
        %v2009 = vunpack.c.h.b16 %v1896
        %v2010 = vunpack.c.l.b16 %v1897
        %v2011 = vunpack.c.h.b16 %v1897
        %v2012 = vunpack.c.l.b16 %v1898
        %v2013 = vunpack.c.h.b16 %v1898
        %v2014 = vunpack.c.l.b16 %v1899
        %v2015 = vunpack.c.h.b16 %v1899
        %v2016 = vunpack.c.l.b16 %v1900
        %v2017 = vunpack.c.h.b16 %v1900
        %v2018 = vunpack.c.l.b16 %v1901
        %v2019 = vunpack.c.h.b16 %v1901
        %v2020 = vunpack.c.l.b16 %v1902
        %v2021 = vunpack.c.h.b16 %v1902
        %v2022 = vunpack.c.l.b16 %v1903
        %v2023 = vunpack.c.h.b16 %v1903
        %v2024 = vunpack.c.l.b16 %v1904
        %v2025 = vunpack.c.h.b16 %v1904
        %v2026 = vunpack.c.l.b16 %v1905
        %v2027 = vunpack.c.h.b16 %v1905
        %v2028 = vunpack.c.l.b16 %v1906
        %v2029 = vunpack.c.h.b16 %v1906
        %v2030 = vunpack.c.l.b16 %v1907
        %v2031 = vunpack.c.h.b16 %v1907
        %v2032 = vunpack.c.l.b16 %v1908
        %v2033 = vunpack.c.h.b16 %v1908
        %v2034 = vunpack.c.l.b16 %v1909
        %v2035 = vunpack.c.h.b16 %v1909
        %v2036 = vunpack.c.l.b16 %v1910
        %v2037 = vunpack.c.h.b16 %v1910
        %v2038 = vunpack.c.l.b16 %v1911
        %v2039 = vunpack.c.h.b16 %v1911
        %v2040 = vunpack.c.l.b16 %v1912
        %v2041 = vunpack.c.h.b16 %v1912
        %v2042 = vunpack.c.l.b16 %v1913
        %v2043 = vunpack.c.h.b16 %v1913
        %v2044 = vunpack.c.l.b16 %v1914
        %v2045 = vunpack.c.h.b16 %v1914
        %v2046 = vunpack.c.l.b16 %v1915
        %v2047 = vunpack.c.h.b16 %v1915
        %v2048 = vunpack.c.l.b16 %v1916
        %v2049 = vunpack.c.h.b16 %v1916
        %v2050 = vunpack.c.l.b16 %v1917
        %v2051 = vunpack.c.h.b16 %v1917
        %v2052 = vunpack.c.l.b16 %v1918
        %v2053 = vunpack.c.h.b16 %v1918
        %v2054 = vunpack.c.l.b16 %v1919
        %v2055 = vunpack.c.h.b16 %v1919
        %v2056 = vunpack.c.l.b16 %v1920
        %v2057 = vunpack.c.h.b16 %v1920
        %v2058 = vunpack.c.l.b16 %v1921
        %v2059 = vunpack.c.h.b16 %v1921
        %v2060 = vpack.c.b16 %v1990, %v1988
        %v2061 = vpack.c.b16 %v1991, %v1989
        %v2062 = vpack.c.b16 %v1994, %v1992
        %v2063 = vpack.c.b16 %v1995, %v1993
        %v2064 = vpack.c.b16 %v1998, %v1996
        %v2065 = vpack.c.b16 %v1999, %v1997
        %v2066 = vpack.c.b16 %v2002, %v2000
        %v2067 = vpack.c.b16 %v2003, %v2001
        %v2068 = vpack.c.b16 %v2006, %v2004
        %v2069 = vpack.c.b16 %v2007, %v2005
        %v2070 = vpack.c.b16 %v2010, %v2008
        %v2071 = vpack.c.b16 %v2011, %v2009
        %v2072 = vpack.c.b16 %v2014, %v2012
        %v2073 = vpack.c.b16 %v2015, %v2013
        %v2074 = vpack.c.b16 %v2018, %v2016
        %v2075 = vpack.c.b16 %v2019, %v2017
        %v2076 = vpack.c.b16 %v2022, %v2020
        %v2077 = vpack.c.b16 %v2023, %v2021
        %v2078 = vpack.c.b16 %v2026, %v2024
        %v2079 = vpack.c.b16 %v2027, %v2025
        %v2080 = vpack.c.b16 %v2030, %v2028
        %v2081 = vpack.c.b16 %v2031, %v2029
        %v2082 = vpack.c.b16 %v2034, %v2032
        %v2083 = vpack.c.b16 %v2035, %v2033
        %v2084 = vpack.c.b16 %v2038, %v2036
        %v2085 = vpack.c.b16 %v2039, %v2037
        %v2086 = vpack.c.b16 %v2042, %v2040
        %v2087 = vpack.c.b16 %v2043, %v2041
        %v2088 = vpack.c.b16 %v2046, %v2044
        %v2089 = vpack.c.b16 %v2047, %v2045
        %v2090 = vpack.c.b16 %v2050, %v2048
        %v2091 = vpack.c.b16 %v2051, %v2049
        %v2092 = vpack.c.b16 %v2054, %v2052
        %v2093 = vpack.c.b16 %v2055, %v2053
        %v2094 = vpack.c.b16 %v2058, %v2056
        %v2095 = vpack.c.b16 %v2059, %v2057
        %v2133 = vsel %vm1173, %v1944, 0
        %v2136 = vsel %vm1173, %v1947, 0
        %2138 = vmatpush.bf16.msra.mxu0 %v2074
        %2139 = vmatpush.bf16.msra.mxu0 %v2072
        %2140 = vmatpush.bf16.msra.mxu0 %v2070
        %2141 = vmatpush.bf16.msra.mxu0 %v2068
        %2142 = vmatpush.bf16.msra.mxu0 %v2066
        %2143 = vmatpush.bf16.msra.mxu0 %v2064
        %2144 = vmatpush.bf16.msra.mxu0 %v2062
        %2145 = vmatpush.bf16.msra.mxu0 %v2060
        %2146 = vmatmul.bf16.gmra.mxu0 %v1942
        %v2147 = vpop.f32.mrf.mxu0
        %v2148 = vadd.f32 0.0, %v2147
        %v2149 = vpop.f32.mrf.mxu0
        %v2150 = vadd.f32 0.0, %v2149
        %2151 = vmatmul.bf16.gmra.mxu0 %v1945
        %v2152 = vpop.f32.mrf.mxu0
        %v2153 = vadd.f32 0.0, %v2152
        %v2154 = vpop.f32.mrf.mxu0
        %v2155 = vadd.f32 0.0, %v2154
        %2156 = vdwg.mxu0
        %2157 = vmatpush.bf16.msra.mxu0 %v2090
        %2158 = vmatpush.bf16.msra.mxu0 %v2088
        %2159 = vmatpush.bf16.msra.mxu0 %v2086
        %2160 = vmatpush.bf16.msra.mxu0 %v2084
        %2161 = vmatpush.bf16.msra.mxu0 %v2082
        %2162 = vmatpush.bf16.msra.mxu0 %v2080
        %2163 = vmatpush.bf16.msra.mxu0 %v2078
        %2164 = vmatpush.bf16.msra.mxu0 %v2076
        %2165 = vmatmul.bf16.gmra.mxu0 %v1943
        %v2166 = vpop.f32.mrf.mxu0
        %v2167 = vadd.f32 %v2148, %v2166
        %v2168 = vpop.f32.mrf.mxu0
        %v2169 = vadd.f32 %v2150, %v2168
        %2170 = vmatmul.bf16.gmra.mxu0 %v1946
        %v2171 = vpop.f32.mrf.mxu0
        %v2172 = vadd.f32 %v2153, %v2171
        %v2173 = vpop.f32.mrf.mxu0
        %v2174 = vadd.f32 %v2155, %v2173
        %2175 = vdwg.mxu0
        %2176 = vmatpush.bf16.msra.mxu0 0
        %2177 = vmatpush.bf16.msra.mxu0 0
        %2178 = vmatpush.bf16.msra.mxu0 0
        %2179 = vmatpush.bf16.msra.mxu0 0
        %2180 = vmatpush.bf16.msra.mxu0 0
        %2181 = vmatpush.bf16.msra.mxu0 0
        %2182 = vmatpush.bf16.msra.mxu0 %v2094
        %2183 = vmatpush.bf16.msra.mxu0 %v2092
        %2184 = vmatmul.bf16.gmra.mxu0 %v2133
        %v2185 = vpop.f32.mrf.mxu0
        %v2186 = vadd.f32 %v2167, %v2185
        %v2187 = vpop.f32.mrf.mxu0
        %v2188 = vadd.f32 %v2169, %v2187
        %2189 = vmatmul.bf16.gmra.mxu0 %v2136
        %v2190 = vpop.f32.mrf.mxu0
        %v2191 = vadd.f32 %v2172, %v2190
        %v2192 = vpop.f32.mrf.mxu0
        %v2193 = vadd.f32 %v2174, %v2192
        %2194 = vdwg.mxu0
        %2195 = vmatpush.bf16.msra.mxu0 %v2075
        %2196 = vmatpush.bf16.msra.mxu0 %v2073
        %2197 = vmatpush.bf16.msra.mxu0 %v2071
        %2198 = vmatpush.bf16.msra.mxu0 %v2069
        %2199 = vmatpush.bf16.msra.mxu0 %v2067
        %2200 = vmatpush.bf16.msra.mxu0 %v2065
        %2201 = vmatpush.bf16.msra.mxu0 %v2063
        %2202 = vmatpush.bf16.msra.mxu0 %v2061
        %2203 = vmatmul.bf16.gmra.mxu0 %v1942
        %v2204 = vpop.f32.mrf.mxu0
        %v2205 = vadd.f32 0.0, %v2204
        %v2206 = vpop.f32.mrf.mxu0
        %v2207 = vadd.f32 0.0, %v2206
        %2208 = vmatmul.bf16.gmra.mxu0 %v1945
        %v2209 = vpop.f32.mrf.mxu0
        %v2210 = vadd.f32 0.0, %v2209
        %v2211 = vpop.f32.mrf.mxu0
        %v2212 = vadd.f32 0.0, %v2211
        %2213 = vdwg.mxu0
        %2214 = vmatpush.bf16.msra.mxu0 %v2091
        %2215 = vmatpush.bf16.msra.mxu0 %v2089
        %2216 = vmatpush.bf16.msra.mxu0 %v2087
        %2217 = vmatpush.bf16.msra.mxu0 %v2085
        %2218 = vmatpush.bf16.msra.mxu0 %v2083
        %2219 = vmatpush.bf16.msra.mxu0 %v2081
        %2220 = vmatpush.bf16.msra.mxu0 %v2079
        %2221 = vmatpush.bf16.msra.mxu0 %v2077
        %2222 = vmatmul.bf16.gmra.mxu0 %v1943
        %v2223 = vpop.f32.mrf.mxu0
        %v2224 = vadd.f32 %v2205, %v2223
        %v2225 = vpop.f32.mrf.mxu0
        %v2226 = vadd.f32 %v2207, %v2225
        %2227 = vmatmul.bf16.gmra.mxu0 %v1946
        %v2228 = vpop.f32.mrf.mxu0
        %v2229 = vadd.f32 %v2210, %v2228
        %v2230 = vpop.f32.mrf.mxu0
        %v2231 = vadd.f32 %v2212, %v2230
        %2232 = vdwg.mxu0
        %2233 = vmatpush.bf16.msra.mxu0 0
        %2234 = vmatpush.bf16.msra.mxu0 0
        %2235 = vmatpush.bf16.msra.mxu0 0
        %2236 = vmatpush.bf16.msra.mxu0 0
        %2237 = vmatpush.bf16.msra.mxu0 0
        %2238 = vmatpush.bf16.msra.mxu0 0
        %2239 = vmatpush.bf16.msra.mxu0 %v2095
        %2240 = vmatpush.bf16.msra.mxu0 %v2093
        %2241 = vmatmul.bf16.gmra.mxu0 %v2133
        %v2242 = vpop.f32.mrf.mxu0
        %v2243 = vadd.f32 %v2224, %v2242
        %v2244 = vpop.f32.mrf.mxu0
        %v2245 = vadd.f32 %v2226, %v2244
        %2246 = vmatmul.bf16.gmra.mxu0 %v2136
        %v2247 = vpop.f32.mrf.mxu0
        %v2248 = vadd.f32 %v2229, %v2247
        %v2249 = vpop.f32.mrf.mxu0
        %v2250 = vadd.f32 %v2231, %v2249
        %2251 = vdwg.mxu0
        %v2252 = vld [vmem:[%s6] sm:$0xff]
        %v2253 = vld [vmem:[%s6 + $0x8] sm:$0xff]
        %v2254 = vld [vmem:[%s6 + $0x10] sm:$0xff]
        %v2255 = vld [vmem:[%s6 + $0x18] sm:$0xff]
        %2257 = vset.pattern.permute.xlu0 0
        %2258 = vperm.xlu0 %2257, %v2252
        %v2259 = vpop.permute.xlu0 %2258
        %2262 = vset.pattern.permute.xlu0 0
        %2263 = vperm.xlu0 %2262, %v2253
        %v2264 = vpop.permute.xlu0 %2263
        %2267 = vset.pattern.permute.xlu0 0
        %2268 = vperm.xlu0 %2267, %v2254
        %v2269 = vpop.permute.xlu0 %2268
        %2272 = vset.pattern.permute.xlu0 0
        %2273 = vperm.xlu0 %2272, %v2255
        %v2274 = vpop.permute.xlu0 %2273
        %v2276 = vmul.f32 %v2186, %v2259
        %v2277 = vmul.f32 %v2243, %v2259
        %v2278 = vmul.f32 %v2188, %v2264
        %v2279 = vmul.f32 %v2245, %v2264
        %v2280 = vmul.f32 %v2191, %v2269
        %v2281 = vmul.f32 %v2248, %v2269
        %v2282 = vmul.f32 %v2193, %v2274
        %v2283 = vmul.f32 %v2250, %v2274
        %v2284 = vld [vmem:[%s7] sm:$0xff]
        %v2285 = vld [vmem:[%s7 + $0x8] sm:$0xff]
        %v2286 = vld [vmem:[%s7 + $0x10] sm:$0xff]
        %v2287 = vld [vmem:[%s7 + $0x18] sm:$0xff]
        %2289 = vset.pattern.permute.xlu0 0
        %2290 = vperm.xlu0 %2289, %v2284
        %v2291 = vpop.permute.xlu0 %2290
        %2294 = vset.pattern.permute.xlu0 0
        %2295 = vperm.xlu0 %2294, %v2285
        %v2296 = vpop.permute.xlu0 %2295
        %2299 = vset.pattern.permute.xlu0 0
        %2300 = vperm.xlu0 %2299, %v2286
        %v2301 = vpop.permute.xlu0 %2300
        %2304 = vset.pattern.permute.xlu0 0
        %2305 = vperm.xlu0 %2304, %v2287
        %v2306 = vpop.permute.xlu0 %2305
        %v2308 = vadd.f32 %v2276, %v2291
        %v2309 = vadd.f32 %v2277, %v2291
        %v2310 = vadd.f32 %v2278, %v2296
        %v2311 = vadd.f32 %v2279, %v2296
        %v2312 = vadd.f32 %v2280, %v2301
        %v2313 = vadd.f32 %v2281, %v2301
        %v2314 = vadd.f32 %v2282, %v2306
        %v2315 = vadd.f32 %v2283, %v2306
        %v2316 = vadd.f32 %v2308, %v2309
        %2317 = vadd.xlane.f32.xlu0 %v2316
        %v2318 = vpop.xlane.xlu0 %2317
        %v2319 = vadd.f32 %v2310, %v2311
        %2320 = vadd.xlane.f32.xlu0 %v2319
        %v2321 = vpop.xlane.xlu0 %2320
        %v2322 = vadd.f32 %v2312, %v2313
        %2323 = vadd.xlane.f32.xlu0 %v2322
        %v2324 = vpop.xlane.xlu0 %2323
        %v2325 = vadd.f32 %v2314, %v2315
        %2326 = vadd.xlane.f32.xlu0 %v2325
        %v2327 = vpop.xlane.xlu0 %2326
        %v2328 = vrcp.pop 256.0
        %v2329 = vmul.f32 256.0, %v2328
        %v2330 = vsub.f32 1.0, %v2329
        %v2331 = vmul.f32 %v2328, %v2330
        %v2332 = vadd.f32 %v2328, %v2331
        %vm2333 = vweird.f32 %v2328
        %v2334 = vsel %vm2333, %v2328, %v2332
        %v2335 = vmul.f32 %v2318, %v2334
        %v2336 = vmul.f32 %v2321, %v2334
        %v2337 = vmul.f32 %v2324, %v2334
        %v2338 = vmul.f32 %v2327, %v2334
        %v2339 = vld [vmem:[%s8] sm:$0xff]
        %v2340 = vld [vmem:[%s8 + $0x8] sm:$0xff]
        %v2341 = vld [vmem:[%s8 + $0x10] sm:$0xff]
        %v2342 = vld [vmem:[%s8 + $0x18] sm:$0xff]
        %v2343 = vmul.f32 %v2339, %v2335
        %v2344 = vmul.f32 %v2340, %v2336
        %v2345 = vmul.f32 %v2341, %v2337
        %v2346 = vmul.f32 %v2342, %v2338
        %vm2347 = vcmask 15360
        %v2348 = vsel %vm2347, %v2343, 0.0
        %v2349 = vsel %vm2347, %v2344, 0.0
        %v2350 = vadd.f32 %v2348, %v2349
        %v2351 = vsel %vm2347, %v2345, 0.0
        %v2352 = vadd.f32 %v2350, %v2351
        %v2353 = vsel %vm2347, %v2346, 0.0
        %v2354 = vadd.f32 %v2352, %v2353
        %v2355 = vrot.slane %v2354, 4
        %v2356 = vadd.f32 %v2354, %v2355
        %v2357 = vrot.slane %v2356, 2
        %v2358 = vadd.f32 %v2356, %v2357
        %v2359 = vrot.slane %v2358, 1
        %v2360 = vadd.f32 %v2358, %v2359
        %v2361 = vmax.f32 %v2360, 0.0
        %v2362 = vld [vmem:[%s9] sm:$0xff]
        %v2363 = vld [vmem:[%s9 + $0x8] sm:$0xff]
        %v2364 = vld [vmem:[%s9 + $0x10] sm:$0xff]
        %v2365 = vld [vmem:[%s9 + $0x18] sm:$0xff]
        %v2366 = vmul.f32 %v2362, %v2361
        %v2367 = vmul.f32 %v2363, %v2361
        %v2368 = vmul.f32 %v2364, %v2361
        %v2369 = vmul.f32 %v2365, %v2361
        %v2370 = vsel %vm2347, %v2366, 0.0
        %2371 = vadd.xlane.f32.xlu0 %v2370
        %v2372 = vpop.xlane.xlu0 %2371
        %v2373 = vsel %vm2347, %v2367, 0.0
        %2374 = vadd.xlane.f32.xlu0 %v2373
        %v2375 = vpop.xlane.xlu0 %2374
        %v2376 = vsel %vm2347, %v2368, 0.0
        %2377 = vadd.xlane.f32.xlu0 %v2376
        %v2378 = vpop.xlane.xlu0 %2377
        %v2379 = vsel %vm2347, %v2369, 0.0
        %2380 = vadd.xlane.f32.xlu0 %v2379
        %v2381 = vpop.xlane.xlu0 %2380
        %v2382 = vxor.u32 %v2372, 2147483648
        %v2383 = vxor.u32 %v2375, 2147483648
        %v2384 = vxor.u32 %v2378, 2147483648
        %v2385 = vxor.u32 %v2381, 2147483648
        %v2386 = vmul.f32 %v2382, 1.442695
        %v2387 = vpow.pop %v2386
        %v2388 = vmul.f32 %v2383, 1.442695
        %v2389 = vpow.pop %v2388
        %v2390 = vmul.f32 %v2384, 1.442695
        %v2391 = vpow.pop %v2390
        %v2392 = vmul.f32 %v2385, 1.442695
        %v2393 = vpow.pop %v2392
        %v2394 = vadd.f32 %v2387, 1.0
        %v2395 = vadd.f32 %v2389, 1.0
        %v2396 = vadd.f32 %v2391, 1.0
        %v2397 = vadd.f32 %v2393, 1.0
        %v2398 = vrcp.pop %v2394
        %v2399 = vmul.f32 %v2394, %v2398
        %v2400 = vsub.f32 1.0, %v2399
        %v2401 = vmul.f32 %v2398, %v2400
        %v2402 = vadd.f32 %v2398, %v2401
        %vm2403 = vweird.f32 %v2394
        %vm2404 = vweird.f32 %v2398
        %vm2405 = vmor %vm2403, %vm2404
        %v2406 = vsel %vm2405, %v2398, %v2402
        %v2407 = vand.u32 2147483647, %v2394
        %vm2408 = vcmp.eq.f32.partialorder %v2407, 8.507059e+37
        %v2409 = vand.u32 %v2394, 2147483648
        %v2410 = vor.u32 1.1754944e-38, %v2409
        %v2411 = vsel %vm2408, %v2410, %v2406
        %v2412 = vmul.f32 1.0, %v2411
        %v2413 = vrcp.pop %v2395
        %v2414 = vmul.f32 %v2395, %v2413
        %v2415 = vsub.f32 1.0, %v2414
        %v2416 = vmul.f32 %v2413, %v2415
        %v2417 = vadd.f32 %v2413, %v2416
        %vm2418 = vweird.f32 %v2395
        %vm2419 = vweird.f32 %v2413
        %vm2420 = vmor %vm2418, %vm2419
        %v2421 = vsel %vm2420, %v2413, %v2417
        %v2422 = vand.u32 2147483647, %v2395
        %vm2423 = vcmp.eq.f32.partialorder %v2422, 8.507059e+37
        %v2424 = vand.u32 %v2395, 2147483648
        %v2425 = vor.u32 1.1754944e-38, %v2424
        %v2426 = vsel %vm2423, %v2425, %v2421
        %v2427 = vmul.f32 1.0, %v2426
        %v2428 = vrcp.pop %v2396
        %v2429 = vmul.f32 %v2396, %v2428
        %v2430 = vsub.f32 1.0, %v2429
        %v2431 = vmul.f32 %v2428, %v2430
        %v2432 = vadd.f32 %v2428, %v2431
        %vm2433 = vweird.f32 %v2396
        %vm2434 = vweird.f32 %v2428
        %vm2435 = vmor %vm2433, %vm2434
        %v2436 = vsel %vm2435, %v2428, %v2432
        %v2437 = vand.u32 2147483647, %v2396
        %vm2438 = vcmp.eq.f32.partialorder %v2437, 8.507059e+37
        %v2439 = vand.u32 %v2396, 2147483648
        %v2440 = vor.u32 1.1754944e-38, %v2439
        %v2441 = vsel %vm2438, %v2440, %v2436
        %v2442 = vmul.f32 1.0, %v2441
        %v2443 = vrcp.pop %v2397
        %v2444 = vmul.f32 %v2397, %v2443
        %v2445 = vsub.f32 1.0, %v2444
        %v2446 = vmul.f32 %v2443, %v2445
        %v2447 = vadd.f32 %v2443, %v2446
        %vm2448 = vweird.f32 %v2397
        %vm2449 = vweird.f32 %v2443
        %vm2450 = vmor %vm2448, %vm2449
        %v2451 = vsel %vm2450, %v2443, %v2447
        %v2452 = vand.u32 2147483647, %v2397
        %vm2453 = vcmp.eq.f32.partialorder %v2452, 8.507059e+37
        %v2454 = vand.u32 %v2397, 2147483648
        %v2455 = vor.u32 1.1754944e-38, %v2454
        %v2456 = vsel %vm2453, %v2455, %v2451
        %v2457 = vmul.f32 1.0, %v2456
        %v2458 = vmul.f32 %v2308, %v2412
        %v2459 = vmul.f32 %v2309, %v2412
        %v2460 = vmul.f32 %v2310, %v2427
        %v2461 = vmul.f32 %v2311, %v2427
        %v2462 = vmul.f32 %v2312, %v2442
        %v2463 = vmul.f32 %v2313, %v2442
        %v2464 = vmul.f32 %v2314, %v2457
        %v2465 = vmul.f32 %v2315, %v2457
        %v2466 = vld [vmem:[%s342] sm:$0xff]
        %v2467 = vld [vmem:[%s342 + $0x8] sm:$0xff]
        %v2468 = vld [vmem:[%s342 + $0x10] sm:$0xff]
        %v2469 = vld [vmem:[%s342 + $0x18] sm:$0xff]
        %v2470 = vld [vmem:[%s342 + $0x20] sm:$0xff]
        %v2471 = vld [vmem:[%s342 + $0x28] sm:$0xff]
        %v2472 = vld [vmem:[%s342 + $0x30] sm:$0xff]
        %v2473 = vld [vmem:[%s342 + $0x38] sm:$0xff]
        %v2474 = vadd.f32 %v2458, %v2466
        %v2475 = vadd.f32 %v2459, %v2467
        %v2476 = vadd.f32 %v2460, %v2468
        %v2477 = vadd.f32 %v2461, %v2469
        %v2478 = vadd.f32 %v2462, %v2470
        %v2479 = vadd.f32 %v2463, %v2471
        %v2480 = vadd.f32 %v2464, %v2472
        %v2481 = vadd.f32 %v2465, %v2473
        %v2482 = vmax.f32 %v2474, 0.0
        %v2483 = vmax.f32 %v2475, 0.0
        %v2484 = vmax.f32 %v2476, 0.0
        %v2485 = vmax.f32 %v2477, 0.0
        %v2486 = vmax.f32 %v2478, 0.0
        %v2487 = vmax.f32 %v2479, 0.0
        %v2488 = vmax.f32 %v2480, 0.0
        %v2489 = vmax.f32 %v2481, 0.0
        %2490 = vst [vmem:[%s379] sm:$0xff] %v2482
        %2491 = vst [vmem:[%s379 + $0x8] sm:$0xff] %v2483
        %2492 = vst [vmem:[%s379 + $0x10] sm:$0xff] %v2484
        %2493 = vst [vmem:[%s379 + $0x18] sm:$0xff] %v2485
        %2494 = vst [vmem:[%s379 + $0x20] sm:$0xff] %v2486
        %2495 = vst [vmem:[%s379 + $0x28] sm:$0xff] %v2487
        %2496 = vst [vmem:[%s379 + $0x30] sm:$0xff] %v2488
        %2497 = vst [vmem:[%s379 + $0x38] sm:$0xff] %v2489
        %s2498 = sand.u32 %s250, 1
        %s2499 = scalar_lea.sflag [#allocation5], %s2498
        %s2500 = sand.u32 %s250, 1
        %s2501 = smul.addr %s2500, 64
        %s2502 = scalar_lea.vmem [#allocation6], %s2501
        // Predicated region
        $region65: #{tpu_custom_call.1} parent=59 // pred_check
          %p2503 = pneg %p260
        $region66: #{tpu_custom_call.1} parent=59 // pred_check_branch
          %2505 = sbr.rel (%p2503) target = $region68
        $region67: #{tpu_custom_call.1} parent=59 // pred_region
          %s2506 = smul.u32 2, %s27
          %2508 = vsyncadd %s2499, 0
          %s2509 = smul.addr %s2506, 8
          %s2510 = scalar_lea.hbm %s10, %s2509
          %s2511 = sshll.u32 %s2502, 4
          %s2512 = int_to_ptr.vmem [resolvable:$true] %s2511
          %s2513 = sshll.u32 %s2510, 4
          %s2514 = int_to_ptr.hbm [resolvable:$true] %s2513
          %2519 = dma.vmem_to_hbm [thread:$0]  %s2512, 1024, %s2514, %s2499, 256, 512, 16
        $region68: #{tpu_custom_call.1} parent=59 // pred_fallthru
          _
      $region60: #{tpu_custom_call.1} parent=5 // pred_fallthru
        _
      %p2520 = scmp.le.s32.totalorder 2, %s22
      // Predicated region
      $region69: #{tpu_custom_call.1} parent=5 // pred_check
        %p2521 = pneg %p2520
      $region70: #{tpu_custom_call.1} parent=5 // pred_check_branch
        %2523 = sbr.rel (%p2521) target = $region72
      $region71: #{tpu_custom_call.1} parent=5 // pred_region
        %s2524 = ssub.s32 %s22, 2
        // Predicated region
        $region73: #{tpu_custom_call.1} parent=71 // pred_check
          %p2525 = pneg %p266
        $region74: #{tpu_custom_call.1} parent=71 // pred_check_branch
          %2527 = sbr.rel (%p2525) target = $region76
        $region75: #{tpu_custom_call.1} parent=71 // pred_region
          %s2528 = sand.u32 %s251, 1
          %s2529 = scalar_lea.sflag [#allocation5], %s2528
          %s2530 = sand.u32 %s251, 1
          %s2531 = smul.addr %s2530, 64
          %s2532 = scalar_lea.vmem [#allocation6], %s2531
          %2534 = dma.done %s2529, 1024
        $region76: #{tpu_custom_call.1} parent=71 // pred_fallthru
          _
      $region72: #{tpu_custom_call.1} parent=5 // pred_fallthru
        _
    $region6: #{tpu_custom_call.1} parent=1 // loop_footer
      %s26 = sadd.s32 1, %s22
    $region7: #{tpu_custom_call.1} parent=1 // loop_footer_branch
      %21 = sbr.rel target = $region3
    $region8: #{tpu_custom_call.1} parent=1 // loop_exit
      _
    %2535 = vsyncpa [#allocation4], 1
    %s2536 = scalar_lea.sflag [#allocation4], 1
    %2537 = vsyncpa %s2536, 1
    %2538 = vsyncpa [#allocation5], 1
    %s2539 = scalar_lea.sflag [#allocation5], 1
    %2540 = vsyncpa %s2539, 1

</llo_original>
